<compile_context>
chip_gen: v7x
topology: tpu7x:2x2x1
jax: 0.10.0
libtpu: 0.0.40
codegen_flags: <defaults>
</compile_context>

<pallas_src>
import jax
import jax.numpy as jnp
from jax.experimental import pallas as pl
from jax.experimental.pallas import tpu as pltpu

_SUBLANE = 8  # batch tiles kept a multiple of the 8-row sublane width


def _round_up(x: int, m: int) -> int:
    return (x + m - 1) // m * m


def _num_tensorcores() -> int:
    """Best-effort TensorCores-per-device count (v7x has 2; v5e/v6e have 1)."""
    try:
        kind = (jax.devices()[0].device_kind or "").lower()
        if "v7" in kind:
            return 2
    except Exception:
        pass
    return 1


def _choose_batch_tiling(batch: int, batch_tile: int, num_cores: int):
    """One batch tile per TensorCore for small batches, capped at `batch_tile` rows;
    tiles are a multiple of 8 sublanes.  Returns (tile_rows, padded_batch)."""
    b8 = _round_up(max(batch, 1), _SUBLANE)
    per_core = pl.cdiv(b8, max(num_cores, 1))
    bt = min(_round_up(per_core, _SUBLANE), _round_up(batch_tile, _SUBLANE))
    bt = max(bt, _SUBLANE)
    b_pad = _round_up(b8, bt)
    return bt, b_pad


# ---------------------------------------------------------------------------
# Kernel
# ---------------------------------------------------------------------------
def _make_fcnet_kernel(num_layers: int, out_dims, compute_dtype):
    """Fused MLP kernel.  refs = (x_ref, w_0, ..., w_{L-1}, b_ref, o_ref).

    x_ref : (batch_tile, d_in)        f32
    w_i   : (in_i, out_i)             compute_dtype (bf16)
    b_ref : (num_layers, max_out)     f32  (row i = layer i's bias, zero padded)
    o_ref : (batch_tile, d_out)       f32
    """

    def kernel(*refs):
        x_ref = refs[0]
        w_refs = refs[1:1 + num_layers]
        b_ref = refs[1 + num_layers]
        o_ref = refs[2 + num_layers]

        b_all = b_ref[...]                             # (L, max_out) f32, whole-resident
        h = x_ref[...].astype(compute_dtype)           # bf16 operand for the MXU
        for li in range(num_layers):
            w = w_refs[li][...]                        # (in_i, out_i) bf16
            b = b_all[li:li + 1, :out_dims[li]]        # (1, out_i) f32, static slice
            # bf16 x bf16 -> f32 accumulation on the MXU, bias add in f32.
            z = jnp.dot(h, w, preferred_element_type=jnp.float32) + b
            if li < num_layers - 1:
                # bf16-resident activation; relu(cast(z)) == cast(relu(z)) exactly.
                h = jnp.maximum(z.astype(compute_dtype), 0.0)
            else:
                o_ref[...] = z.astype(o_ref.dtype)     # final layer: f32, no ReLU

    return kernel


# ---------------------------------------------------------------------------
# Parameter preparation (fold input affine, cast weights, stack biases)
# ---------------------------------------------------------------------------
def _prepare_params(weights, biases, input_scale, input_shift, compute_dtype):
    """Folds the input affine into layer 0 (scalar OR per-feature scale/shift), casts
    weights to `compute_dtype`, and stacks all biases into one (L, max_out) f32 array."""
    d_in = weights[0].shape[0]
    scale = jnp.broadcast_to(jnp.asarray(input_scale, jnp.float32), (d_in,))
    shift = jnp.broadcast_to(jnp.asarray(input_shift, jnp.float32), (d_in,))
    w0_f32 = jnp.asarray(weights[0], jnp.float32)
    # (scale*x + shift) @ W0 + b0  ==  x @ (scale[:,None]*W0) + (b0 + shift @ W0)
    w0 = scale[:, None] * w0_f32
    b0 = jnp.asarray(biases[0], jnp.float32) + shift @ w0_f32

    ws = [w0] + [jnp.asarray(w, jnp.float32) for w in weights[1:]]
    bs = [b0] + [jnp.asarray(b, jnp.float32) for b in biases[1:]]
    out_dims = tuple(w.shape[1] for w in ws)
    max_out = max(out_dims)

    b_stack = jnp.zeros((len(bs), max_out), jnp.float32)
    for i, b in enumerate(bs):
        b_stack = b_stack.at[i, : b.shape[0]].set(b)

    ws = [w.astype(compute_dtype) for w in ws]
    return ws, b_stack, out_dims


# ---------------------------------------------------------------------------
# Wrapper
# ---------------------------------------------------------------------------
def fcnet_forward(x, weights, biases, *, input_scale=1.0, input_shift=0.0,
                  batch_tile=512, compute_dtype=jnp.bfloat16, num_cores=None):
    """Fused FCNet forward pass with Pallas.

    x:        (B, input_dim) float32
    weights:  list of (in_i, out_i) float32
    biases:   list of (out_i,) float32
    """
    B, d_in = x.shape
    num_layers = len(weights)
    assert len(biases) == num_layers
    assert weights[0].shape[0] == d_in
    d_out = weights[-1].shape[1]

    ws, b_stack, out_dims = _prepare_params(
        weights, biases, input_scale, input_shift, compute_dtype)

    if num_cores is None:
        num_cores = _num_tensorcores()
    bt, b_pad = _choose_batch_tiling(B, batch_tile, num_cores)

    # Pad the batch dim ONLY when it doesn't divide the tile; feature dims keep their
    # true (narrow) sizes so HBM reads/writes are not inflated.
    if b_pad != B:
        x_in = jnp.zeros((b_pad, d_in), x.dtype).at[:B].set(x)
    else:
        x_in = x

    # x is tiled over batch; weights & stacked biases are whole-resident (block = full
    # array, so the (8,128) divisibility rule does not apply to the narrow dims).
    in_specs = [pl.BlockSpec((bt, d_in), lambda i: (i, 0))]
    for w in ws:
        in_specs.append(pl.BlockSpec(w.shape, lambda i: (0, 0)))
    in_specs.append(pl.BlockSpec(b_stack.shape, lambda i: (0, 0)))
    out_spec = pl.BlockSpec((bt, d_out), lambda i: (i, 0))

    kernel = _make_fcnet_kernel(num_layers, out_dims, compute_dtype)

    out = pl.pallas_call(
        kernel,
        out_shape=jax.ShapeDtypeStruct((b_pad, d_out), jnp.float32),
        grid_spec=pltpu.PrefetchScalarGridSpec(
            num_scalar_prefetch=0,
            grid=(b_pad // bt,),
            in_specs=in_specs,
            out_specs=out_spec,
        ),
        compiler_params=pltpu.CompilerParams(
            dimension_semantics=("parallel",),
            vmem_limit_bytes=32 * 1024 * 1024,  # lifts v5e default, headroom on v7x
        ),
    )(x_in, *ws, b_stack)

    return out if b_pad == B else out[:B]


# ---------------------------------------------------------------------------
# References
# ---------------------------------------------------------------------------
def fcnet_reference_f32(x, weights, biases, *, input_scale, input_shift):
    """Pure f32 reference of the PyTorch module's forward."""
    h = input_scale * x + input_shift
    n = len(weights)
    for i, (w, b) in enumerate(zip(weights, biases)):
        h = h @ w + b
        if i < n - 1:
            h = jnp.maximum(h, 0.0)
    return h


def fcnet_reference_matched(x, weights, biases, *, input_scale, input_shift,
                            compute_dtype=jnp.bfloat16):
    """Reference applying the exact fold / bf16-weight / f32-accumulate math of the
    kernel, via plain XLA."""
    ws, b_stack, out_dims = _prepare_params(
        weights, biases, input_scale, input_shift, compute_dtype)
    h = x.astype(compute_dtype)
    n = len(ws)
    for i, w in enumerate(ws):
        z = jnp.dot(h, w, preferred_element_type=jnp.float32) + b_stack[i:i + 1, :out_dims[i]]
        if i < n - 1:
            h = jnp.maximum(z.astype(compute_dtype), 0.0)
        else:
            return z


def init_fcnet_params(key, input_dim, layer_widths):
    """Deterministic init mimicking nn.Linear defaults (uniform +/- 1/sqrt(fan_in))."""
    dims = [input_dim] + list(layer_widths)
    weights, biases = [], []
    for i in range(len(layer_widths)):
        fan_in, fan_out = dims[i], dims[i + 1]
        key, kw, kb = jax.random.split(key, 3)
        bound = 1.0 / jnp.sqrt(fan_in)
        w = jax.random.uniform(kw, (fan_in, fan_out), jnp.float32, -bound, bound)
        b = jax.random.uniform(kb, (fan_out,), jnp.float32, -bound, bound)
        weights.append(w)
        biases.append(b)
    return weights, biases


if __name__ == "__main__":
    key = jax.random.PRNGKey(0)

    # Small problem consistent with the module: MLP 16 -> 32 -> 32 -> 4 on 512 rows.
    batch = 512
    input_dim = 16
    layer_widths = (32, 32, 4)
    input_scale = 1.5
    input_shift = 0.25

    key, kx = jax.random.split(key)
    x = jax.random.normal(kx, (batch, input_dim), jnp.float32)
    weights, biases = init_fcnet_params(key, input_dim, layer_widths)

    out = fcnet_forward(x, weights, biases,
                        input_scale=input_scale, input_shift=input_shift)
    out = jax.block_until_ready(out)
    assert out.shape == (batch, layer_widths[-1])

    # Tight check vs. a reference using identical bf16-weight / f32-accumulate math.
    ref_matched = fcnet_reference_matched(
        x, weights, biases, input_scale=input_scale, input_shift=input_shift)
    assert jnp.allclose(out, ref_matched, atol=1e-4, rtol=1e-4), \
        "mismatch vs bf16-matched reference"

    # Loose sanity check vs. the pure-f32 module semantics (bf16 rounding tolerance).
    ref_f32 = fcnet_reference_f32(
        x, weights, biases, input_scale=input_scale, input_shift=input_shift)
    assert jnp.allclose(out, ref_f32, atol=1e-1, rtol=1e-1), \
        "mismatch vs f32 reference"

    print("KERNEL_OK")
</pallas_src>

<mosaic_0001>
module attributes {stable_mosaic.version = 11 : i64} {
  func.func @kernel(%arg0: i32, %arg1: memref<512x16xf32, #tpu.memory_space<vmem>>, %arg2: memref<16x32xbf16, #tpu.memory_space<vmem>>, %arg3: memref<32x32xbf16, #tpu.memory_space<vmem>>, %arg4: memref<32x4xbf16, #tpu.memory_space<vmem>>, %arg5: memref<3x32xf32, #tpu.memory_space<vmem>>, %arg6: memref<512x4xf32, #tpu.memory_space<vmem>>) attributes {dimension_semantics = [#tpu.dimension_semantics<parallel>], iteration_bounds = array<i64: 1>, scalar_prefetch = 0 : i64, scratch_operands = 0 : i64, tpu.core_type = #tpu.core_type<tc>, window_params = [{transform_indices = @transform_0, window_bounds = array<i64: 512, 16>}, {pipeline_mode = #tpu.pipeline_mode<synchronous>, transform_indices = @transform_1, window_bounds = array<i64: 16, 32>}, {pipeline_mode = #tpu.pipeline_mode<synchronous>, transform_indices = @transform_2, window_bounds = array<i64: 32, 32>}, {pipeline_mode = #tpu.pipeline_mode<synchronous>, transform_indices = @transform_3, window_bounds = array<i64: 32, 4>}, {pipeline_mode = #tpu.pipeline_mode<synchronous>, transform_indices = @transform_4, window_bounds = array<i64: 3, 32>}, {transform_indices = @transform_5, window_bounds = array<i64: 512, 4>}]} {
    %c0 = arith.constant 0 : index
    %c0_0 = arith.constant 0 : index
    %0 = vector.load %arg5[%c0, %c0_0] : memref<3x32xf32, #tpu.memory_space<vmem>>, vector<3x32xf32>
    %c0_1 = arith.constant 0 : index
    %c0_2 = arith.constant 0 : index
    %1 = vector.load %arg1[%c0_1, %c0_2] : memref<512x16xf32, #tpu.memory_space<vmem>>, vector<512x16xf32>
    %2 = arith.truncf %1 : vector<512x16xf32> to vector<512x16xbf16>
    %c0_3 = arith.constant 0 : index
    %c0_4 = arith.constant 0 : index
    %3 = vector.load %arg2[%c0_3, %c0_4] : memref<16x32xbf16, #tpu.memory_space<vmem>>, vector<16x32xbf16>
    %4 = vector.extract_strided_slice %0 {offsets = [0, 0], sizes = [1, 32], strides = [1, 1]} : vector<3x32xf32> to vector<1x32xf32>
    %cst = arith.constant dense<0.000000e+00> : vector<512x32xf32>
    %5 = tpu.matmul %2, %3, %cst {dimension_numbers = #tpu.dot_dimension_numbers<[1], [0], [0], [1], [0, 0, 1, 1], [], []>} : vector<512x16xbf16>, vector<16x32xbf16>, vector<512x32xf32> -> vector<512x32xf32>
    %6 = vector.broadcast %4 : vector<1x32xf32> to vector<512x32xf32>
    %7 = arith.addf %5, %6 : vector<512x32xf32>
    %8 = arith.truncf %7 : vector<512x32xf32> to vector<512x32xbf16>
    %cst_5 = arith.constant 0.000000e+00 : bf16
    %9 = vector.broadcast %cst_5 : bf16 to vector<512x32xbf16>
    %10 = arith.maximumf %8, %9 : vector<512x32xbf16>
    %c0_6 = arith.constant 0 : index
    %c0_7 = arith.constant 0 : index
    %11 = vector.load %arg3[%c0_6, %c0_7] : memref<32x32xbf16, #tpu.memory_space<vmem>>, vector<32x32xbf16>
    %12 = vector.extract_strided_slice %0 {offsets = [1, 0], sizes = [1, 32], strides = [1, 1]} : vector<3x32xf32> to vector<1x32xf32>
    %cst_8 = arith.constant dense<0.000000e+00> : vector<512x32xf32>
    %13 = tpu.matmul %10, %11, %cst_8 {dimension_numbers = #tpu.dot_dimension_numbers<[1], [0], [0], [1], [0, 0, 1, 1], [], []>} : vector<512x32xbf16>, vector<32x32xbf16>, vector<512x32xf32> -> vector<512x32xf32>
    %14 = vector.broadcast %12 : vector<1x32xf32> to vector<512x32xf32>
    %15 = arith.addf %13, %14 : vector<512x32xf32>
    %16 = arith.truncf %15 : vector<512x32xf32> to vector<512x32xbf16>
    %cst_9 = arith.constant 0.000000e+00 : bf16
    %17 = vector.broadcast %cst_9 : bf16 to vector<512x32xbf16>
    %18 = arith.maximumf %16, %17 : vector<512x32xbf16>
    %c0_10 = arith.constant 0 : index
    %c0_11 = arith.constant 0 : index
    %19 = vector.load %arg4[%c0_10, %c0_11] : memref<32x4xbf16, #tpu.memory_space<vmem>>, vector<32x4xbf16>
    %20 = vector.extract_strided_slice %0 {offsets = [2, 0], sizes = [1, 4], strides = [1, 1]} : vector<3x32xf32> to vector<1x4xf32>
    %cst_12 = arith.constant dense<0.000000e+00> : vector<512x4xf32>
    %21 = tpu.matmul %18, %19, %cst_12 {dimension_numbers = #tpu.dot_dimension_numbers<[1], [0], [0], [1], [0, 0, 1, 1], [], []>} : vector<512x32xbf16>, vector<32x4xbf16>, vector<512x4xf32> -> vector<512x4xf32>
    %22 = vector.broadcast %20 : vector<1x4xf32> to vector<512x4xf32>
    %23 = arith.addf %21, %22 : vector<512x4xf32>
    %c0_13 = arith.constant 0 : index
    %c0_14 = arith.constant 0 : index
    %24 = vector.load %arg6[%c0_13, %c0_14] : memref<512x4xf32, #tpu.memory_space<vmem>>, vector<512x4xf32>
    tpu.vector_store %arg6[%c0_13, %c0_14], %23 {strides = array<i32>} : memref<512x4xf32, #tpu.memory_space<vmem>>, vector<512x4xf32>,
    return
  }
  func.func @transform_0(%arg0: i32) -> (i32, i32) {
    %c0_i32 = arith.constant 0 : i32
    %c0_i32_0 = arith.constant 0 : i32
    return %arg0, %c0_i32 : i32, i32
  }
  func.func @transform_1(%arg0: i32) -> (i32, i32) {
    %c0_i32 = arith.constant 0 : i32
    %c0_i32_0 = arith.constant 0 : i32
    %c0_i32_1 = arith.constant 0 : i32
    return %c0_i32, %c0_i32_0 : i32, i32
  }
  func.func @transform_2(%arg0: i32) -> (i32, i32) {
    %c0_i32 = arith.constant 0 : i32
    %c0_i32_0 = arith.constant 0 : i32
    %c0_i32_1 = arith.constant 0 : i32
    return %c0_i32, %c0_i32_0 : i32, i32
  }
  func.func @transform_3(%arg0: i32) -> (i32, i32) {
    %c0_i32 = arith.constant 0 : i32
    %c0_i32_0 = arith.constant 0 : i32
    %c0_i32_1 = arith.constant 0 : i32
    return %c0_i32, %c0_i32_0 : i32, i32
  }
  func.func @transform_4(%arg0: i32) -> (i32, i32) {
    %c0_i32 = arith.constant 0 : i32
    %c0_i32_0 = arith.constant 0 : i32
    %c0_i32_1 = arith.constant 0 : i32
    return %c0_i32, %c0_i32_0 : i32, i32
  }
  func.func @transform_5(%arg0: i32) -> (i32, i32) {
    %c0_i32 = arith.constant 0 : i32
    %c0_i32_0 = arith.constant 0 : i32
    return %arg0, %c0_i32 : i32, i32
  }
}

</mosaic_0001>

<llo_original>
// kernel: tpu_custom_call.1
$region0: #{tpu_custom_call.1}
  #allocation0 [shape = 'u32[]', space=smem, size = 0x4, offset = 0x4, fixed_abs, tag = 'smem constant byte address 0x4 - core index']
  #allocation1 [shape = 'u32[144,128]{1,0:T(1,128)}', space=vmem, size = 0x12000, scoped, tag = 'internal scratch']
  %s0 = inlined_call_operand.vmem [shape: f32[512,16], index: 0, kind: input, shape index: {}]
  %s1 = inlined_call_operand.vmem [shape: bf16[16,32], index: 1, kind: input, shape index: {}]
  %s2 = inlined_call_operand.vmem [shape: bf16[32,32], index: 2, kind: input, shape index: {}]
  %s3 = inlined_call_operand.vmem [shape: bf16[32,4], index: 3, kind: input, shape index: {}]
  %s4 = inlined_call_operand.vmem [shape: f32[3,32], index: 4, kind: input, shape index: {}]
  %s5 = inlined_call_operand.vmem [shape: f32[512,4], index: 5, kind: output, shape index: {}]
  %s6 = sld [smem:[#allocation0]]
  $region30: #{tpu_custom_call.1} parent=0
    _
  %s8 = ssub.s32 1, %s6
  %s9 = scalar_select 0, %s8, %s6
  // Predicated region
  $region2: #{tpu_custom_call.1} parent=0 // pred_check
    _
  $region3: #{tpu_custom_call.1} parent=0 // pred_check_branch
    %11 = sbr.rel (0) target = $region5
  $region4: #{tpu_custom_call.1} parent=0 // pred_region
    _
  $region5: #{tpu_custom_call.1} parent=0 // pred_fallthru
    _
  // Predicated region
  $region6: #{tpu_custom_call.1} parent=0 // pred_check
    _
  $region7: #{tpu_custom_call.1} parent=0 // pred_check_branch
    %13 = sbr.rel (0) target = $region9
  $region8: #{tpu_custom_call.1} parent=0 // pred_region
    _
  $region9: #{tpu_custom_call.1} parent=0 // pred_fallthru
    _
  // Predicated region
  $region10: #{tpu_custom_call.1} parent=0 // pred_check
    _
  $region11: #{tpu_custom_call.1} parent=0 // pred_check_branch
    %15 = sbr.rel (0) target = $region13
  $region12: #{tpu_custom_call.1} parent=0 // pred_region
    _
  $region13: #{tpu_custom_call.1} parent=0 // pred_fallthru
    _
  // Predicated region
  $region14: #{tpu_custom_call.1} parent=0 // pred_check
    _
  $region15: #{tpu_custom_call.1} parent=0 // pred_check_branch
    %17 = sbr.rel (0) target = $region17
  $region16: #{tpu_custom_call.1} parent=0 // pred_region
    _
  $region17: #{tpu_custom_call.1} parent=0 // pred_fallthru
    _
  // Predicated region
  $region18: #{tpu_custom_call.1} parent=0 // pred_check
    _
  $region19: #{tpu_custom_call.1} parent=0 // pred_check_branch
    %19 = sbr.rel (0) target = $region21
  $region20: #{tpu_custom_call.1} parent=0 // pred_region
    _
  $region21: #{tpu_custom_call.1} parent=0 // pred_fallthru
    _
  %v21 = vld [vmem:[%s4] sm:$0x7]
  %v22 = vld [vmem:[%s0] sm:$0xff]
  %v23 = vld [vmem:[%s0 + $0x8] sm:$0xff]
  %v24 = vld [vmem:[%s0 + $0x10] sm:$0xff]
  %v25 = vld [vmem:[%s0 + $0x18] sm:$0xff]
  %v26 = vld [vmem:[%s0 + $0x20] sm:$0xff]
  %v27 = vld [vmem:[%s0 + $0x28] sm:$0xff]
  %v28 = vld [vmem:[%s0 + $0x30] sm:$0xff]
  %v29 = vld [vmem:[%s0 + $0x38] sm:$0xff]
  %v30 = vld [vmem:[%s0 + $0x40] sm:$0xff]
  %v31 = vld [vmem:[%s0 + $0x48] sm:$0xff]
  %v32 = vld [vmem:[%s0 + $0x50] sm:$0xff]
  %v33 = vld [vmem:[%s0 + $0x58] sm:$0xff]
  %v34 = vld [vmem:[%s0 + $0x60] sm:$0xff]
  %v35 = vld [vmem:[%s0 + $0x68] sm:$0xff]
  %v36 = vld [vmem:[%s0 + $0x70] sm:$0xff]
  %v37 = vld [vmem:[%s0 + $0x78] sm:$0xff]
  %v38 = vld [vmem:[%s0 + $0x80] sm:$0xff]
  %v39 = vld [vmem:[%s0 + $0x88] sm:$0xff]
  %v40 = vld [vmem:[%s0 + $0x90] sm:$0xff]
  %v41 = vld [vmem:[%s0 + $0x98] sm:$0xff]
  %v42 = vld [vmem:[%s0 + $0xa0] sm:$0xff]
  %v43 = vld [vmem:[%s0 + $0xa8] sm:$0xff]
  %v44 = vld [vmem:[%s0 + $0xb0] sm:$0xff]
  %v45 = vld [vmem:[%s0 + $0xb8] sm:$0xff]
  %v46 = vld [vmem:[%s0 + $0xc0] sm:$0xff]
  %v47 = vld [vmem:[%s0 + $0xc8] sm:$0xff]
  %v48 = vld [vmem:[%s0 + $0xd0] sm:$0xff]
  %v49 = vld [vmem:[%s0 + $0xd8] sm:$0xff]
  %v50 = vld [vmem:[%s0 + $0xe0] sm:$0xff]
  %v51 = vld [vmem:[%s0 + $0xe8] sm:$0xff]
  %v52 = vld [vmem:[%s0 + $0xf0] sm:$0xff]
  %v53 = vld [vmem:[%s0 + $0xf8] sm:$0xff]
  %v54 = vld [vmem:[%s0 + $0x100] sm:$0xff]
  %v55 = vld [vmem:[%s0 + $0x108] sm:$0xff]
  %v56 = vld [vmem:[%s0 + $0x110] sm:$0xff]
  %v57 = vld [vmem:[%s0 + $0x118] sm:$0xff]
  %v58 = vld [vmem:[%s0 + $0x120] sm:$0xff]
  %v59 = vld [vmem:[%s0 + $0x128] sm:$0xff]
  %v60 = vld [vmem:[%s0 + $0x130] sm:$0xff]
  %v61 = vld [vmem:[%s0 + $0x138] sm:$0xff]
  %v62 = vld [vmem:[%s0 + $0x140] sm:$0xff]
  %v63 = vld [vmem:[%s0 + $0x148] sm:$0xff]
  %v64 = vld [vmem:[%s0 + $0x150] sm:$0xff]
  %v65 = vld [vmem:[%s0 + $0x158] sm:$0xff]
  %v66 = vld [vmem:[%s0 + $0x160] sm:$0xff]
  %v67 = vld [vmem:[%s0 + $0x168] sm:$0xff]
  %v68 = vld [vmem:[%s0 + $0x170] sm:$0xff]
  %v69 = vld [vmem:[%s0 + $0x178] sm:$0xff]
  %v70 = vld [vmem:[%s0 + $0x180] sm:$0xff]
  %v71 = vld [vmem:[%s0 + $0x188] sm:$0xff]
  %v72 = vld [vmem:[%s0 + $0x190] sm:$0xff]
  %v73 = vld [vmem:[%s0 + $0x198] sm:$0xff]
  %v74 = vld [vmem:[%s0 + $0x1a0] sm:$0xff]
  %v75 = vld [vmem:[%s0 + $0x1a8] sm:$0xff]
  %v76 = vld [vmem:[%s0 + $0x1b0] sm:$0xff]
  %v77 = vld [vmem:[%s0 + $0x1b8] sm:$0xff]
  %v78 = vld [vmem:[%s0 + $0x1c0] sm:$0xff]
  %v79 = vld [vmem:[%s0 + $0x1c8] sm:$0xff]
  %v80 = vld [vmem:[%s0 + $0x1d0] sm:$0xff]
  %v81 = vld [vmem:[%s0 + $0x1d8] sm:$0xff]
  %v82 = vld [vmem:[%s0 + $0x1e0] sm:$0xff]
  %v83 = vld [vmem:[%s0 + $0x1e8] sm:$0xff]
  %v84 = vld [vmem:[%s0 + $0x1f0] sm:$0xff]
  %v85 = vld [vmem:[%s0 + $0x1f8] sm:$0xff]
  %v86 = vpack.c.bf16 %v23, %v22
  %v87 = vpack.c.bf16 %v25, %v24
  %v88 = vpack.c.bf16 %v27, %v26
  %v89 = vpack.c.bf16 %v29, %v28
  %v90 = vpack.c.bf16 %v31, %v30
  %v91 = vpack.c.bf16 %v33, %v32
  %v92 = vpack.c.bf16 %v35, %v34
  %v93 = vpack.c.bf16 %v37, %v36
  %v94 = vpack.c.bf16 %v39, %v38
  %v95 = vpack.c.bf16 %v41, %v40
  %v96 = vpack.c.bf16 %v43, %v42
  %v97 = vpack.c.bf16 %v45, %v44
  %v98 = vpack.c.bf16 %v47, %v46
  %v99 = vpack.c.bf16 %v49, %v48
  %v100 = vpack.c.bf16 %v51, %v50
  %v101 = vpack.c.bf16 %v53, %v52
  %v102 = vpack.c.bf16 %v55, %v54
  %v103 = vpack.c.bf16 %v57, %v56
  %v104 = vpack.c.bf16 %v59, %v58
  %v105 = vpack.c.bf16 %v61, %v60
  %v106 = vpack.c.bf16 %v63, %v62
  %v107 = vpack.c.bf16 %v65, %v64
  %v108 = vpack.c.bf16 %v67, %v66
  %v109 = vpack.c.bf16 %v69, %v68
  %v110 = vpack.c.bf16 %v71, %v70
  %v111 = vpack.c.bf16 %v73, %v72
  %v112 = vpack.c.bf16 %v75, %v74
  %v113 = vpack.c.bf16 %v77, %v76
  %v114 = vpack.c.bf16 %v79, %v78
  %v115 = vpack.c.bf16 %v81, %v80
  %v116 = vpack.c.bf16 %v83, %v82
  %v117 = vpack.c.bf16 %v85, %v84
  %v118 = vld [vmem:[%s1] sm:$0xf]
  %v119 = vld [vmem:[%s1 + $0x4] sm:$0xf]
  %v120 = vlaneseq
  %v121 = vshrl.u32 %v120, 7
  %v122 = vsub.s32 0, %v121
  %v123 = vrot.slane %v21, %v122
  %v126 = vunpack.c.l.b16 %v118
  %v127 = vunpack.c.l.b16 %v119
  %v128 = vpack.c.b16 %v127, %v126
  %vm130 = vcmask 130048
  %v132 = vsel %vm130, %v86, 0
  %v135 = vsel %vm130, %v87, 0
  %v138 = vsel %vm130, %v88, 0
  %v141 = vsel %vm130, %v89, 0
  %v144 = vsel %vm130, %v90, 0
  %v147 = vsel %vm130, %v91, 0
  %v150 = vsel %vm130, %v92, 0
  %v153 = vsel %vm130, %v93, 0
  %v156 = vsel %vm130, %v94, 0
  %v159 = vsel %vm130, %v95, 0
  %v162 = vsel %vm130, %v96, 0
  %v165 = vsel %vm130, %v97, 0
  %v168 = vsel %vm130, %v98, 0
  %v171 = vsel %vm130, %v99, 0
  %v174 = vsel %vm130, %v100, 0
  %v177 = vsel %vm130, %v101, 0
  %v180 = vsel %vm130, %v102, 0
  %v183 = vsel %vm130, %v103, 0
  %v186 = vsel %vm130, %v104, 0
  %v189 = vsel %vm130, %v105, 0
  %v192 = vsel %vm130, %v106, 0
  %v195 = vsel %vm130, %v107, 0
  %v198 = vsel %vm130, %v108, 0
  %v201 = vsel %vm130, %v109, 0
  %v204 = vsel %vm130, %v110, 0
  %v207 = vsel %vm130, %v111, 0
  %v210 = vsel %vm130, %v112, 0
  %v213 = vsel %vm130, %v113, 0
  %v216 = vsel %vm130, %v114, 0
  %v219 = vsel %vm130, %v115, 0
  %v222 = vsel %vm130, %v116, 0
  %v225 = vsel %vm130, %v117, 0
  %227 = vmatprep.subr.bf16.mxu0 0
  %228 = vmatpush1.bf16.msra.mxu0 %v128
  %229 = vmatprep.subr.bf16.mxu0 0
  %230 = vmatpush1.bf16.msra.mxu0 0
  %231 = vmatprep.subr.bf16.mxu0 0
  %232 = vmatpush1.bf16.msra.mxu0 0
  %233 = vmatprep.subr.bf16.mxu0 0
  %234 = vmatpush1.bf16.msra.mxu0 0
  %235 = vmatprep.subr.bf16.mxu0 0
  %236 = vmatpush1.bf16.msra.mxu0 0
  %237 = vmatprep.subr.bf16.mxu0 0
  %238 = vmatpush1.bf16.msra.mxu0 0
  %239 = vmatprep.subr.bf16.mxu0 0
  %240 = vmatpush1.bf16.msra.mxu0 0
  %241 = vmatprep.subr.bf16.mxu0 0
  %242 = vmatpush1.bf16.msra.mxu0 0
  %243 = vmatprep.subr.bf16.mxu0 0
  %244 = vmatpush1.bf16.msra.mxu0 0
  %245 = vmatprep.subr.bf16.mxu0 0
  %246 = vmatpush1.bf16.msra.mxu0 0
  %247 = vmatprep.subr.bf16.mxu0 0
  %248 = vmatpush1.bf16.msra.mxu0 0
  %249 = vmatprep.subr.bf16.mxu0 0
  %250 = vmatpush1.bf16.msra.mxu0 0
  %251 = vmatprep.subr.bf16.mxu0 0
  %252 = vmatpush1.bf16.msra.mxu0 0
  %253 = vmatprep.subr.bf16.mxu0 0
  %254 = vmatpush1.bf16.msra.mxu0 0
  %255 = vmatprep.subr.bf16.mxu0 0
  %256 = vmatpush1.bf16.msra.mxu0 0
  %257 = vmatprep.subr.bf16.mxu0 0
  %258 = vmatpush1.bf16.msra.mxu0 0
  %259 = vmatprep.mubr.bf16.mxu0 0
  %260 = vmatmul.mubr.bf16.gmra.mrb[0].mxu0 %v132
  %v261 = vpop.f32.mrb[0].mxu0
  %v262 = vadd.f32 %v123, %v261
  %v263 = vpop.f32.mrb[0].mxu0
  %v264 = vpop.f32.mrb[0].mxu0
  %v265 = vadd.f32 %v123, %v264
  %v266 = vpop.f32.mrb[0].mxu0
  %267 = vmatprep.mubr.bf16.mxu0 0
  %268 = vmatmul.mubr.bf16.gmra.mrb[0].mxu0 %v135
  %v269 = vpop.f32.mrb[0].mxu0
  %v270 = vadd.f32 %v123, %v269
  %v271 = vpop.f32.mrb[0].mxu0
  %v272 = vpop.f32.mrb[0].mxu0
  %v273 = vadd.f32 %v123, %v272
  %v274 = vpop.f32.mrb[0].mxu0
  %275 = vmatprep.mubr.bf16.mxu0 0
  %276 = vmatmul.mubr.bf16.gmra.mrb[0].mxu0 %v138
  %v277 = vpop.f32.mrb[0].mxu0
  %v278 = vadd.f32 %v123, %v277
  %v279 = vpop.f32.mrb[0].mxu0
  %v280 = vpop.f32.mrb[0].mxu0
  %v281 = vadd.f32 %v123, %v280
  %v282 = vpop.f32.mrb[0].mxu0
  %283 = vmatprep.mubr.bf16.mxu0 0
  %284 = vmatmul.mubr.bf16.gmra.mrb[0].mxu0 %v141
  %v285 = vpop.f32.mrb[0].mxu0
  %v286 = vadd.f32 %v123, %v285
  %v287 = vpop.f32.mrb[0].mxu0
  %v288 = vpop.f32.mrb[0].mxu0
  %v289 = vadd.f32 %v123, %v288
  %v290 = vpop.f32.mrb[0].mxu0
  %291 = vmatprep.mubr.bf16.mxu0 0
  %292 = vmatmul.mubr.bf16.gmra.mrb[0].mxu0 %v144
  %v293 = vpop.f32.mrb[0].mxu0
  %v294 = vadd.f32 %v123, %v293
  %v295 = vpop.f32.mrb[0].mxu0
  %v296 = vpop.f32.mrb[0].mxu0
  %v297 = vadd.f32 %v123, %v296
  %v298 = vpop.f32.mrb[0].mxu0
  %299 = vmatprep.mubr.bf16.mxu0 0
  %300 = vmatmul.mubr.bf16.gmra.mrb[0].mxu0 %v147
  %v301 = vpop.f32.mrb[0].mxu0
  %v302 = vadd.f32 %v123, %v301
  %v303 = vpop.f32.mrb[0].mxu0
  %v304 = vpop.f32.mrb[0].mxu0
  %v305 = vadd.f32 %v123, %v304
  %v306 = vpop.f32.mrb[0].mxu0
  %307 = vmatprep.mubr.bf16.mxu0 0
  %308 = vmatmul.mubr.bf16.gmra.mrb[0].mxu0 %v150
  %v309 = vpop.f32.mrb[0].mxu0
  %v310 = vadd.f32 %v123, %v309
  %v311 = vpop.f32.mrb[0].mxu0
  %v312 = vpop.f32.mrb[0].mxu0
  %v313 = vadd.f32 %v123, %v312
  %v314 = vpop.f32.mrb[0].mxu0
  %315 = vmatprep.mubr.bf16.mxu0 0
  %316 = vmatmul.mubr.bf16.gmra.mrb[0].mxu0 %v153
  %v317 = vpop.f32.mrb[0].mxu0
  %v318 = vadd.f32 %v123, %v317
  %v319 = vpop.f32.mrb[0].mxu0
  %v320 = vpop.f32.mrb[0].mxu0
  %v321 = vadd.f32 %v123, %v320
  %v322 = vpop.f32.mrb[0].mxu0
  %323 = vmatprep.mubr.bf16.mxu0 0
  %324 = vmatmul.mubr.bf16.gmra.mrb[0].mxu0 %v156
  %v325 = vpop.f32.mrb[0].mxu0
  %v326 = vadd.f32 %v123, %v325
  %v327 = vpop.f32.mrb[0].mxu0
  %v328 = vpop.f32.mrb[0].mxu0
  %v329 = vadd.f32 %v123, %v328
  %v330 = vpop.f32.mrb[0].mxu0
  %331 = vmatprep.mubr.bf16.mxu0 0
  %332 = vmatmul.mubr.bf16.gmra.mrb[0].mxu0 %v159
  %v333 = vpop.f32.mrb[0].mxu0
  %v334 = vadd.f32 %v123, %v333
  %v335 = vpop.f32.mrb[0].mxu0
  %v336 = vpop.f32.mrb[0].mxu0
  %v337 = vadd.f32 %v123, %v336
  %v338 = vpop.f32.mrb[0].mxu0
  %339 = vmatprep.mubr.bf16.mxu0 0
  %340 = vmatmul.mubr.bf16.gmra.mrb[0].mxu0 %v162
  %v341 = vpop.f32.mrb[0].mxu0
  %v342 = vadd.f32 %v123, %v341
  %v343 = vpop.f32.mrb[0].mxu0
  %v344 = vpop.f32.mrb[0].mxu0
  %v345 = vadd.f32 %v123, %v344
  %v346 = vpop.f32.mrb[0].mxu0
  %347 = vmatprep.mubr.bf16.mxu0 0
  %348 = vmatmul.mubr.bf16.gmra.mrb[0].mxu0 %v165
  %v349 = vpop.f32.mrb[0].mxu0
  %v350 = vadd.f32 %v123, %v349
  %v351 = vpop.f32.mrb[0].mxu0
  %v352 = vpop.f32.mrb[0].mxu0
  %v353 = vadd.f32 %v123, %v352
  %v354 = vpop.f32.mrb[0].mxu0
  %355 = vmatprep.mubr.bf16.mxu0 0
  %356 = vmatmul.mubr.bf16.gmra.mrb[0].mxu0 %v168
  %v357 = vpop.f32.mrb[0].mxu0
  %v358 = vadd.f32 %v123, %v357
  %v359 = vpop.f32.mrb[0].mxu0
  %v360 = vpop.f32.mrb[0].mxu0
  %v361 = vadd.f32 %v123, %v360
  %v362 = vpop.f32.mrb[0].mxu0
  %363 = vmatprep.mubr.bf16.mxu0 0
  %364 = vmatmul.mubr.bf16.gmra.mrb[0].mxu0 %v171
  %v365 = vpop.f32.mrb[0].mxu0
  %v366 = vadd.f32 %v123, %v365
  %v367 = vpop.f32.mrb[0].mxu0
  %v368 = vpop.f32.mrb[0].mxu0
  %v369 = vadd.f32 %v123, %v368
  %v370 = vpop.f32.mrb[0].mxu0
  %371 = vmatprep.mubr.bf16.mxu0 0
  %372 = vmatmul.mubr.bf16.gmra.mrb[0].mxu0 %v174
  %v373 = vpop.f32.mrb[0].mxu0
  %v374 = vadd.f32 %v123, %v373
  %v375 = vpop.f32.mrb[0].mxu0
  %v376 = vpop.f32.mrb[0].mxu0
  %v377 = vadd.f32 %v123, %v376
  %v378 = vpop.f32.mrb[0].mxu0
  %379 = vmatprep.mubr.bf16.mxu0 0
  %380 = vmatmul.mubr.bf16.gmra.mrb[0].mxu0 %v177
  %v381 = vpop.f32.mrb[0].mxu0
  %v382 = vadd.f32 %v123, %v381
  %v383 = vpop.f32.mrb[0].mxu0
  %v384 = vpop.f32.mrb[0].mxu0
  %v385 = vadd.f32 %v123, %v384
  %v386 = vpop.f32.mrb[0].mxu0
  %387 = vmatprep.mubr.bf16.mxu0 0
  %388 = vmatmul.mubr.bf16.gmra.mrb[0].mxu0 %v180
  %v389 = vpop.f32.mrb[0].mxu0
  %v390 = vadd.f32 %v123, %v389
  %v391 = vpop.f32.mrb[0].mxu0
  %v392 = vpop.f32.mrb[0].mxu0
  %v393 = vadd.f32 %v123, %v392
  %v394 = vpop.f32.mrb[0].mxu0
  %395 = vmatprep.mubr.bf16.mxu0 0
  %396 = vmatmul.mubr.bf16.gmra.mrb[0].mxu0 %v183
  %v397 = vpop.f32.mrb[0].mxu0
  %v398 = vadd.f32 %v123, %v397
  %v399 = vpop.f32.mrb[0].mxu0
  %v400 = vpop.f32.mrb[0].mxu0
  %v401 = vadd.f32 %v123, %v400
  %v402 = vpop.f32.mrb[0].mxu0
  %403 = vmatprep.mubr.bf16.mxu0 0
  %404 = vmatmul.mubr.bf16.gmra.mrb[0].mxu0 %v186
  %v405 = vpop.f32.mrb[0].mxu0
  %v406 = vadd.f32 %v123, %v405
  %v407 = vpop.f32.mrb[0].mxu0
  %v408 = vpop.f32.mrb[0].mxu0
  %v409 = vadd.f32 %v123, %v408
  %v410 = vpop.f32.mrb[0].mxu0
  %411 = vmatprep.mubr.bf16.mxu0 0
  %412 = vmatmul.mubr.bf16.gmra.mrb[0].mxu0 %v189
  %v413 = vpop.f32.mrb[0].mxu0
  %v414 = vadd.f32 %v123, %v413
  %v415 = vpop.f32.mrb[0].mxu0
  %v416 = vpop.f32.mrb[0].mxu0
  %v417 = vadd.f32 %v123, %v416
  %v418 = vpop.f32.mrb[0].mxu0
  %419 = vmatprep.mubr.bf16.mxu0 0
  %420 = vmatmul.mubr.bf16.gmra.mrb[0].mxu0 %v192
  %v421 = vpop.f32.mrb[0].mxu0
  %v422 = vadd.f32 %v123, %v421
  %v423 = vpop.f32.mrb[0].mxu0
  %v424 = vpop.f32.mrb[0].mxu0
  %v425 = vadd.f32 %v123, %v424
  %v426 = vpop.f32.mrb[0].mxu0
  %427 = vmatprep.mubr.bf16.mxu0 0
  %428 = vmatmul.mubr.bf16.gmra.mrb[0].mxu0 %v195
  %v429 = vpop.f32.mrb[0].mxu0
  %v430 = vadd.f32 %v123, %v429
  %v431 = vpop.f32.mrb[0].mxu0
  %v432 = vpop.f32.mrb[0].mxu0
  %v433 = vadd.f32 %v123, %v432
  %v434 = vpop.f32.mrb[0].mxu0
  %435 = vmatprep.mubr.bf16.mxu0 0
  %436 = vmatmul.mubr.bf16.gmra.mrb[0].mxu0 %v198
  %v437 = vpop.f32.mrb[0].mxu0
  %v438 = vadd.f32 %v123, %v437
  %v439 = vpop.f32.mrb[0].mxu0
  %v440 = vpop.f32.mrb[0].mxu0
  %v441 = vadd.f32 %v123, %v440
  %v442 = vpop.f32.mrb[0].mxu0
  %443 = vmatprep.mubr.bf16.mxu0 0
  %444 = vmatmul.mubr.bf16.gmra.mrb[0].mxu0 %v201
  %v445 = vpop.f32.mrb[0].mxu0
  %v446 = vadd.f32 %v123, %v445
  %v447 = vpop.f32.mrb[0].mxu0
  %v448 = vpop.f32.mrb[0].mxu0
  %v449 = vadd.f32 %v123, %v448
  %v450 = vpop.f32.mrb[0].mxu0
  %451 = vmatprep.mubr.bf16.mxu0 0
  %452 = vmatmul.mubr.bf16.gmra.mrb[0].mxu0 %v204
  %v453 = vpop.f32.mrb[0].mxu0
  %v454 = vadd.f32 %v123, %v453
  %v455 = vpop.f32.mrb[0].mxu0
  %v456 = vpop.f32.mrb[0].mxu0
  %v457 = vadd.f32 %v123, %v456
  %v458 = vpop.f32.mrb[0].mxu0
  %459 = vmatprep.mubr.bf16.mxu0 0
  %460 = vmatmul.mubr.bf16.gmra.mrb[0].mxu0 %v207
  %v461 = vpop.f32.mrb[0].mxu0
  %v462 = vadd.f32 %v123, %v461
  %v463 = vpop.f32.mrb[0].mxu0
  %v464 = vpop.f32.mrb[0].mxu0
  %v465 = vadd.f32 %v123, %v464
  %v466 = vpop.f32.mrb[0].mxu0
  %467 = vmatprep.mubr.bf16.mxu0 0
  %468 = vmatmul.mubr.bf16.gmra.mrb[0].mxu0 %v210
  %v469 = vpop.f32.mrb[0].mxu0
  %v470 = vadd.f32 %v123, %v469
  %v471 = vpop.f32.mrb[0].mxu0
  %v472 = vpop.f32.mrb[0].mxu0
  %v473 = vadd.f32 %v123, %v472
  %v474 = vpop.f32.mrb[0].mxu0
  %475 = vmatprep.mubr.bf16.mxu0 0
  %476 = vmatmul.mubr.bf16.gmra.mrb[0].mxu0 %v213
  %v477 = vpop.f32.mrb[0].mxu0
  %v478 = vadd.f32 %v123, %v477
  %v479 = vpop.f32.mrb[0].mxu0
  %v480 = vpop.f32.mrb[0].mxu0
  %v481 = vadd.f32 %v123, %v480
  %v482 = vpop.f32.mrb[0].mxu0
  %483 = vmatprep.mubr.bf16.mxu0 0
  %484 = vmatmul.mubr.bf16.gmra.mrb[0].mxu0 %v216
  %v485 = vpop.f32.mrb[0].mxu0
  %v486 = vadd.f32 %v123, %v485
  %v487 = vpop.f32.mrb[0].mxu0
  %v488 = vpop.f32.mrb[0].mxu0
  %v489 = vadd.f32 %v123, %v488
  %v490 = vpop.f32.mrb[0].mxu0
  %491 = vmatprep.mubr.bf16.mxu0 0
  %492 = vmatmul.mubr.bf16.gmra.mrb[0].mxu0 %v219
  %v493 = vpop.f32.mrb[0].mxu0
  %v494 = vadd.f32 %v123, %v493
  %v495 = vpop.f32.mrb[0].mxu0
  %v496 = vpop.f32.mrb[0].mxu0
  %v497 = vadd.f32 %v123, %v496
  %v498 = vpop.f32.mrb[0].mxu0
  %499 = vmatprep.mubr.bf16.mxu0 0
  %500 = vmatmul.mubr.bf16.gmra.mrb[0].mxu0 %v222
  %v501 = vpop.f32.mrb[0].mxu0
  %v502 = vadd.f32 %v123, %v501
  %v503 = vpop.f32.mrb[0].mxu0
  %v504 = vpop.f32.mrb[0].mxu0
  %v505 = vadd.f32 %v123, %v504
  %v506 = vpop.f32.mrb[0].mxu0
  %507 = vmatprep.mubr.bf16.mxu0 0
  %508 = vmatmul.mubr.bf16.gmra.mrb[0].mxu0 %v225
  %v509 = vpop.f32.mrb[0].mxu0
  %v510 = vadd.f32 %v123, %v509
  %v511 = vpop.f32.mrb[0].mxu0
  %v512 = vpop.f32.mrb[0].mxu0
  %v513 = vadd.f32 %v123, %v512
  %v514 = vpop.f32.mrb[0].mxu0
  %515 = vdwg.mxu0
  %v516 = vpack.c.bf16 %v265, %v262
  %v517 = vpack.c.bf16 %v273, %v270
  %v518 = vpack.c.bf16 %v281, %v278
  %v519 = vpack.c.bf16 %v289, %v286
  %v520 = vpack.c.bf16 %v297, %v294
  %v521 = vpack.c.bf16 %v305, %v302
  %v522 = vpack.c.bf16 %v313, %v310
  %v523 = vpack.c.bf16 %v321, %v318
  %v524 = vpack.c.bf16 %v329, %v326
  %v525 = vpack.c.bf16 %v337, %v334
  %v526 = vpack.c.bf16 %v345, %v342
  %v527 = vpack.c.bf16 %v353, %v350
  %v528 = vpack.c.bf16 %v361, %v358
  %v529 = vpack.c.bf16 %v369, %v366
  %v530 = vpack.c.bf16 %v377, %v374
  %v531 = vpack.c.bf16 %v385, %v382
  %v532 = vpack.c.bf16 %v393, %v390
  %v533 = vpack.c.bf16 %v401, %v398
  %v534 = vpack.c.bf16 %v409, %v406
  %v535 = vpack.c.bf16 %v417, %v414
  %v536 = vpack.c.bf16 %v425, %v422
  %v537 = vpack.c.bf16 %v433, %v430
  %v538 = vpack.c.bf16 %v441, %v438
  %v539 = vpack.c.bf16 %v449, %v446
  %v540 = vpack.c.bf16 %v457, %v454
  %v541 = vpack.c.bf16 %v465, %v462
  %v542 = vpack.c.bf16 %v473, %v470
  %v543 = vpack.c.bf16 %v481, %v478
  %v544 = vpack.c.bf16 %v489, %v486
  %v545 = vpack.c.bf16 %v497, %v494
  %v546 = vpack.c.bf16 %v505, %v502
  %v547 = vpack.c.bf16 %v513, %v510
  %v548 = vmax.bf16 %v516, 0
  %v549 = vmax.bf16 %v517, 0
  %v550 = vmax.bf16 %v518, 0
  %v551 = vmax.bf16 %v519, 0
  %v552 = vmax.bf16 %v520, 0
  %v553 = vmax.bf16 %v521, 0
  %v554 = vmax.bf16 %v522, 0
  %v555 = vmax.bf16 %v523, 0
  %v556 = vmax.bf16 %v524, 0
  %v557 = vmax.bf16 %v525, 0
  %v558 = vmax.bf16 %v526, 0
  %v559 = vmax.bf16 %v527, 0
  %v560 = vmax.bf16 %v528, 0
  %v561 = vmax.bf16 %v529, 0
  %v562 = vmax.bf16 %v530, 0
  %v563 = vmax.bf16 %v531, 0
  %v564 = vmax.bf16 %v532, 0
  %v565 = vmax.bf16 %v533, 0
  %v566 = vmax.bf16 %v534, 0
  %v567 = vmax.bf16 %v535, 0
  %v568 = vmax.bf16 %v536, 0
  %v569 = vmax.bf16 %v537, 0
  %v570 = vmax.bf16 %v538, 0
  %v571 = vmax.bf16 %v539, 0
  %v572 = vmax.bf16 %v540, 0
  %v573 = vmax.bf16 %v541, 0
  %v574 = vmax.bf16 %v542, 0
  %v575 = vmax.bf16 %v543, 0
  %v576 = vmax.bf16 %v544, 0
  %v577 = vmax.bf16 %v545, 0
  %v578 = vmax.bf16 %v546, 0
  %v579 = vmax.bf16 %v547, 0
  %v580 = vld [vmem:[%s2] sm:$0xf]
  %v581 = vld [vmem:[%s2 + $0x4] sm:$0xf]
  %v582 = vld [vmem:[%s2 + $0x8] sm:$0xf]
  %v583 = vld [vmem:[%s2 + $0xc] sm:$0xf]
  %v584 = vlaneseq
  %v585 = vshrl.u32 %v584, 7
  %v586 = vsub.s32 1, %v585
  %v587 = vrot.slane %v21, %v586
  %v592 = vunpack.c.l.b16 %v580
  %v593 = vunpack.c.l.b16 %v581
  %v594 = vunpack.c.l.b16 %v582
  %v595 = vunpack.c.l.b16 %v583
  %v596 = vpack.c.b16 %v593, %v592
  %v597 = vpack.c.b16 %v595, %v594
  %vm600 = vcmask 261120
  %v602 = vsel %vm600, %v548, 0
  %v605 = vsel %vm600, %v549, 0
  %v608 = vsel %vm600, %v550, 0
  %v611 = vsel %vm600, %v551, 0
  %v614 = vsel %vm600, %v552, 0
  %v617 = vsel %vm600, %v553, 0
  %v620 = vsel %vm600, %v554, 0
  %v623 = vsel %vm600, %v555, 0
  %v626 = vsel %vm600, %v556, 0
  %v629 = vsel %vm600, %v557, 0
  %v632 = vsel %vm600, %v558, 0
  %v635 = vsel %vm600, %v559, 0
  %v638 = vsel %vm600, %v560, 0
  %v641 = vsel %vm600, %v561, 0
  %v644 = vsel %vm600, %v562, 0
  %v647 = vsel %vm600, %v563, 0
  %v650 = vsel %vm600, %v564, 0
  %v653 = vsel %vm600, %v565, 0
  %v656 = vsel %vm600, %v566, 0
  %v659 = vsel %vm600, %v567, 0
  %v662 = vsel %vm600, %v568, 0
  %v665 = vsel %vm600, %v569, 0
  %v668 = vsel %vm600, %v570, 0
  %v671 = vsel %vm600, %v571, 0
  %v674 = vsel %vm600, %v572, 0
  %v677 = vsel %vm600, %v573, 0
  %v680 = vsel %vm600, %v574, 0
  %v683 = vsel %vm600, %v575, 0
  %v686 = vsel %vm600, %v576, 0
  %v689 = vsel %vm600, %v577, 0
  %v692 = vsel %vm600, %v578, 0
  %v695 = vsel %vm600, %v579, 0
  %697 = vmatprep.subr.bf16.mxu0 0
  %698 = vmatpush1.bf16.msra.mxu0 %v596
  %699 = vmatprep.subr.bf16.mxu0 0
  %700 = vmatpush1.bf16.msra.mxu0 %v597
  %701 = vmatprep.subr.bf16.mxu0 0
  %702 = vmatpush1.bf16.msra.mxu0 0
  %703 = vmatprep.subr.bf16.mxu0 0
  %704 = vmatpush1.bf16.msra.mxu0 0
  %705 = vmatprep.subr.bf16.mxu0 0
  %706 = vmatpush1.bf16.msra.mxu0 0
  %707 = vmatprep.subr.bf16.mxu0 0
  %708 = vmatpush1.bf16.msra.mxu0 0
  %709 = vmatprep.subr.bf16.mxu0 0
  %710 = vmatpush1.bf16.msra.mxu0 0
  %711 = vmatprep.subr.bf16.mxu0 0
  %712 = vmatpush1.bf16.msra.mxu0 0
  %713 = vmatprep.subr.bf16.mxu0 0
  %714 = vmatpush1.bf16.msra.mxu0 0
  %715 = vmatprep.subr.bf16.mxu0 0
  %716 = vmatpush1.bf16.msra.mxu0 0
  %717 = vmatprep.subr.bf16.mxu0 0
  %718 = vmatpush1.bf16.msra.mxu0 0
  %719 = vmatprep.subr.bf16.mxu0 0
  %720 = vmatpush1.bf16.msra.mxu0 0
  %721 = vmatprep.subr.bf16.mxu0 0
  %722 = vmatpush1.bf16.msra.mxu0 0
  %723 = vmatprep.subr.bf16.mxu0 0
  %724 = vmatpush1.bf16.msra.mxu0 0
  %725 = vmatprep.subr.bf16.mxu0 0
  %726 = vmatpush1.bf16.msra.mxu0 0
  %727 = vmatprep.subr.bf16.mxu0 0
  %728 = vmatpush1.bf16.msra.mxu0 0
  %729 = vmatprep.mubr.bf16.mxu0 0
  %730 = vmatmul.mubr.bf16.gmra.mrb[0].mxu0 %v602
  %v731 = vpop.f32.mrb[0].mxu0
  %v732 = vadd.f32 %v587, %v731
  %v733 = vpop.f32.mrb[0].mxu0
  %v734 = vpop.f32.mrb[0].mxu0
  %v735 = vadd.f32 %v587, %v734
  %v736 = vpop.f32.mrb[0].mxu0
  %737 = vmatprep.mubr.bf16.mxu0 0
  %738 = vmatmul.mubr.bf16.gmra.mrb[0].mxu0 %v605
  %v739 = vpop.f32.mrb[0].mxu0
  %v740 = vadd.f32 %v587, %v739
  %v741 = vpop.f32.mrb[0].mxu0
  %v742 = vpop.f32.mrb[0].mxu0
  %v743 = vadd.f32 %v587, %v742
  %v744 = vpop.f32.mrb[0].mxu0
  %745 = vmatprep.mubr.bf16.mxu0 0
  %746 = vmatmul.mubr.bf16.gmra.mrb[0].mxu0 %v608
  %v747 = vpop.f32.mrb[0].mxu0
  %v748 = vadd.f32 %v587, %v747
  %v749 = vpop.f32.mrb[0].mxu0
  %v750 = vpop.f32.mrb[0].mxu0
  %v751 = vadd.f32 %v587, %v750
  %v752 = vpop.f32.mrb[0].mxu0
  %753 = vmatprep.mubr.bf16.mxu0 0
  %754 = vmatmul.mubr.bf16.gmra.mrb[0].mxu0 %v611
  %v755 = vpop.f32.mrb[0].mxu0
  %v756 = vadd.f32 %v587, %v755
  %v757 = vpop.f32.mrb[0].mxu0
  %v758 = vpop.f32.mrb[0].mxu0
  %v759 = vadd.f32 %v587, %v758
  %v760 = vpop.f32.mrb[0].mxu0
  %761 = vmatprep.mubr.bf16.mxu0 0
  %762 = vmatmul.mubr.bf16.gmra.mrb[0].mxu0 %v614
  %v763 = vpop.f32.mrb[0].mxu0
  %v764 = vadd.f32 %v587, %v763
  %v765 = vpop.f32.mrb[0].mxu0
  %v766 = vpop.f32.mrb[0].mxu0
  %v767 = vadd.f32 %v587, %v766
  %v768 = vpop.f32.mrb[0].mxu0
  %769 = vmatprep.mubr.bf16.mxu0 0
  %770 = vmatmul.mubr.bf16.gmra.mrb[0].mxu0 %v617
  %v771 = vpop.f32.mrb[0].mxu0
  %v772 = vadd.f32 %v587, %v771
  %v773 = vpop.f32.mrb[0].mxu0
  %v774 = vpop.f32.mrb[0].mxu0
  %v775 = vadd.f32 %v587, %v774
  %v776 = vpop.f32.mrb[0].mxu0
  %777 = vmatprep.mubr.bf16.mxu0 0
  %778 = vmatmul.mubr.bf16.gmra.mrb[0].mxu0 %v620
  %v779 = vpop.f32.mrb[0].mxu0
  %v780 = vadd.f32 %v587, %v779
  %v781 = vpop.f32.mrb[0].mxu0
  %v782 = vpop.f32.mrb[0].mxu0
  %v783 = vadd.f32 %v587, %v782
  %v784 = vpop.f32.mrb[0].mxu0
  %785 = vmatprep.mubr.bf16.mxu0 0
  %786 = vmatmul.mubr.bf16.gmra.mrb[0].mxu0 %v623
  %v787 = vpop.f32.mrb[0].mxu0
  %v788 = vadd.f32 %v587, %v787
  %v789 = vpop.f32.mrb[0].mxu0
  %v790 = vpop.f32.mrb[0].mxu0
  %v791 = vadd.f32 %v587, %v790
  %v792 = vpop.f32.mrb[0].mxu0
  %793 = vmatprep.mubr.bf16.mxu0 0
  %794 = vmatmul.mubr.bf16.gmra.mrb[0].mxu0 %v626
  %v795 = vpop.f32.mrb[0].mxu0
  %v796 = vadd.f32 %v587, %v795
  %v797 = vpop.f32.mrb[0].mxu0
  %v798 = vpop.f32.mrb[0].mxu0
  %v799 = vadd.f32 %v587, %v798
  %v800 = vpop.f32.mrb[0].mxu0
  %801 = vmatprep.mubr.bf16.mxu0 0
  %802 = vmatmul.mubr.bf16.gmra.mrb[0].mxu0 %v629
  %v803 = vpop.f32.mrb[0].mxu0
  %v804 = vadd.f32 %v587, %v803
  %v805 = vpop.f32.mrb[0].mxu0
  %v806 = vpop.f32.mrb[0].mxu0
  %v807 = vadd.f32 %v587, %v806
  %v808 = vpop.f32.mrb[0].mxu0
  %809 = vmatprep.mubr.bf16.mxu0 0
  %810 = vmatmul.mubr.bf16.gmra.mrb[0].mxu0 %v632
  %v811 = vpop.f32.mrb[0].mxu0
  %v812 = vadd.f32 %v587, %v811
  %v813 = vpop.f32.mrb[0].mxu0
  %v814 = vpop.f32.mrb[0].mxu0
  %v815 = vadd.f32 %v587, %v814
  %v816 = vpop.f32.mrb[0].mxu0
  %817 = vmatprep.mubr.bf16.mxu0 0
  %818 = vmatmul.mubr.bf16.gmra.mrb[0].mxu0 %v635
  %v819 = vpop.f32.mrb[0].mxu0
  %v820 = vadd.f32 %v587, %v819
  %v821 = vpop.f32.mrb[0].mxu0
  %v822 = vpop.f32.mrb[0].mxu0
  %v823 = vadd.f32 %v587, %v822
  %v824 = vpop.f32.mrb[0].mxu0
  %825 = vmatprep.mubr.bf16.mxu0 0
  %826 = vmatmul.mubr.bf16.gmra.mrb[0].mxu0 %v638
  %v827 = vpop.f32.mrb[0].mxu0
  %v828 = vadd.f32 %v587, %v827
  %v829 = vpop.f32.mrb[0].mxu0
  %v830 = vpop.f32.mrb[0].mxu0
  %v831 = vadd.f32 %v587, %v830
  %v832 = vpop.f32.mrb[0].mxu0
  %833 = vmatprep.mubr.bf16.mxu0 0
  %834 = vmatmul.mubr.bf16.gmra.mrb[0].mxu0 %v641
  %v835 = vpop.f32.mrb[0].mxu0
  %v836 = vadd.f32 %v587, %v835
  %v837 = vpop.f32.mrb[0].mxu0
  %v838 = vpop.f32.mrb[0].mxu0
  %v839 = vadd.f32 %v587, %v838
  %v840 = vpop.f32.mrb[0].mxu0
  %841 = vmatprep.mubr.bf16.mxu0 0
  %842 = vmatmul.mubr.bf16.gmra.mrb[0].mxu0 %v644
  %v843 = vpop.f32.mrb[0].mxu0
  %v844 = vadd.f32 %v587, %v843
  %v845 = vpop.f32.mrb[0].mxu0
  %v846 = vpop.f32.mrb[0].mxu0
  %v847 = vadd.f32 %v587, %v846
  %v848 = vpop.f32.mrb[0].mxu0
  %849 = vmatprep.mubr.bf16.mxu0 0
  %850 = vmatmul.mubr.bf16.gmra.mrb[0].mxu0 %v647
  %v851 = vpop.f32.mrb[0].mxu0
  %v852 = vadd.f32 %v587, %v851
  %v853 = vpop.f32.mrb[0].mxu0
  %v854 = vpop.f32.mrb[0].mxu0
  %v855 = vadd.f32 %v587, %v854
  %v856 = vpop.f32.mrb[0].mxu0
  %857 = vmatprep.mubr.bf16.mxu0 0
  %858 = vmatmul.mubr.bf16.gmra.mrb[0].mxu0 %v650
  %v859 = vpop.f32.mrb[0].mxu0
  %v860 = vadd.f32 %v587, %v859
  %v861 = vpop.f32.mrb[0].mxu0
  %v862 = vpop.f32.mrb[0].mxu0
  %v863 = vadd.f32 %v587, %v862
  %v864 = vpop.f32.mrb[0].mxu0
  %865 = vmatprep.mubr.bf16.mxu0 0
  %866 = vmatmul.mubr.bf16.gmra.mrb[0].mxu0 %v653
  %v867 = vpop.f32.mrb[0].mxu0
  %v868 = vadd.f32 %v587, %v867
  %v869 = vpop.f32.mrb[0].mxu0
  %v870 = vpop.f32.mrb[0].mxu0
  %v871 = vadd.f32 %v587, %v870
  %v872 = vpop.f32.mrb[0].mxu0
  %873 = vmatprep.mubr.bf16.mxu0 0
  %874 = vmatmul.mubr.bf16.gmra.mrb[0].mxu0 %v656
  %v875 = vpop.f32.mrb[0].mxu0
  %v876 = vadd.f32 %v587, %v875
  %v877 = vpop.f32.mrb[0].mxu0
  %v878 = vpop.f32.mrb[0].mxu0
  %v879 = vadd.f32 %v587, %v878
  %v880 = vpop.f32.mrb[0].mxu0
  %881 = vmatprep.mubr.bf16.mxu0 0
  %882 = vmatmul.mubr.bf16.gmra.mrb[0].mxu0 %v659
  %v883 = vpop.f32.mrb[0].mxu0
  %v884 = vadd.f32 %v587, %v883
  %v885 = vpop.f32.mrb[0].mxu0
  %v886 = vpop.f32.mrb[0].mxu0
  %v887 = vadd.f32 %v587, %v886
  %v888 = vpop.f32.mrb[0].mxu0
  %889 = vmatprep.mubr.bf16.mxu0 0
  %890 = vmatmul.mubr.bf16.gmra.mrb[0].mxu0 %v662
  %v891 = vpop.f32.mrb[0].mxu0
  %v892 = vadd.f32 %v587, %v891
  %v893 = vpop.f32.mrb[0].mxu0
  %v894 = vpop.f32.mrb[0].mxu0
  %v895 = vadd.f32 %v587, %v894
  %v896 = vpop.f32.mrb[0].mxu0
  %897 = vmatprep.mubr.bf16.mxu0 0
  %898 = vmatmul.mubr.bf16.gmra.mrb[0].mxu0 %v665
  %v899 = vpop.f32.mrb[0].mxu0
  %v900 = vadd.f32 %v587, %v899
  %v901 = vpop.f32.mrb[0].mxu0
  %v902 = vpop.f32.mrb[0].mxu0
  %v903 = vadd.f32 %v587, %v902
  %v904 = vpop.f32.mrb[0].mxu0
  %905 = vmatprep.mubr.bf16.mxu0 0
  %906 = vmatmul.mubr.bf16.gmra.mrb[0].mxu0 %v668
  %v907 = vpop.f32.mrb[0].mxu0
  %v908 = vadd.f32 %v587, %v907
  %v909 = vpop.f32.mrb[0].mxu0
  %v910 = vpop.f32.mrb[0].mxu0
  %v911 = vadd.f32 %v587, %v910
  %v912 = vpop.f32.mrb[0].mxu0
  %913 = vmatprep.mubr.bf16.mxu0 0
  %914 = vmatmul.mubr.bf16.gmra.mrb[0].mxu0 %v671
  %v915 = vpop.f32.mrb[0].mxu0
  %v916 = vadd.f32 %v587, %v915
  %v917 = vpop.f32.mrb[0].mxu0
  %v918 = vpop.f32.mrb[0].mxu0
  %v919 = vadd.f32 %v587, %v918
  %v920 = vpop.f32.mrb[0].mxu0
  %921 = vmatprep.mubr.bf16.mxu0 0
  %922 = vmatmul.mubr.bf16.gmra.mrb[0].mxu0 %v674
  %v923 = vpop.f32.mrb[0].mxu0
  %v924 = vadd.f32 %v587, %v923
  %v925 = vpop.f32.mrb[0].mxu0
  %v926 = vpop.f32.mrb[0].mxu0
  %v927 = vadd.f32 %v587, %v926
  %v928 = vpop.f32.mrb[0].mxu0
  %929 = vmatprep.mubr.bf16.mxu0 0
  %930 = vmatmul.mubr.bf16.gmra.mrb[0].mxu0 %v677
  %v931 = vpop.f32.mrb[0].mxu0
  %v932 = vadd.f32 %v587, %v931
  %v933 = vpop.f32.mrb[0].mxu0
  %v934 = vpop.f32.mrb[0].mxu0
  %v935 = vadd.f32 %v587, %v934
  %v936 = vpop.f32.mrb[0].mxu0
  %937 = vmatprep.mubr.bf16.mxu0 0
  %938 = vmatmul.mubr.bf16.gmra.mrb[0].mxu0 %v680
  %v939 = vpop.f32.mrb[0].mxu0
  %v940 = vadd.f32 %v587, %v939
  %v941 = vpop.f32.mrb[0].mxu0
  %v942 = vpop.f32.mrb[0].mxu0
  %v943 = vadd.f32 %v587, %v942
  %v944 = vpop.f32.mrb[0].mxu0
  %945 = vmatprep.mubr.bf16.mxu0 0
  %946 = vmatmul.mubr.bf16.gmra.mrb[0].mxu0 %v683
  %v947 = vpop.f32.mrb[0].mxu0
  %v948 = vadd.f32 %v587, %v947
  %v949 = vpop.f32.mrb[0].mxu0
  %v950 = vpop.f32.mrb[0].mxu0
  %v951 = vadd.f32 %v587, %v950
  %v952 = vpop.f32.mrb[0].mxu0
  %953 = vmatprep.mubr.bf16.mxu0 0
  %954 = vmatmul.mubr.bf16.gmra.mrb[0].mxu0 %v686
  %v955 = vpop.f32.mrb[0].mxu0
  %v956 = vadd.f32 %v587, %v955
  %v957 = vpop.f32.mrb[0].mxu0
  %v958 = vpop.f32.mrb[0].mxu0
  %v959 = vadd.f32 %v587, %v958
  %v960 = vpop.f32.mrb[0].mxu0
  %961 = vmatprep.mubr.bf16.mxu0 0
  %962 = vmatmul.mubr.bf16.gmra.mrb[0].mxu0 %v689
  %v963 = vpop.f32.mrb[0].mxu0
  %v964 = vadd.f32 %v587, %v963
  %v965 = vpop.f32.mrb[0].mxu0
  %v966 = vpop.f32.mrb[0].mxu0
  %v967 = vadd.f32 %v587, %v966
  %v968 = vpop.f32.mrb[0].mxu0
  %969 = vmatprep.mubr.bf16.mxu0 0
  %970 = vmatmul.mubr.bf16.gmra.mrb[0].mxu0 %v692
  %v971 = vpop.f32.mrb[0].mxu0
  %v972 = vadd.f32 %v587, %v971
  %v973 = vpop.f32.mrb[0].mxu0
  %v974 = vpop.f32.mrb[0].mxu0
  %v975 = vadd.f32 %v587, %v974
  %v976 = vpop.f32.mrb[0].mxu0
  %977 = vmatprep.mubr.bf16.mxu0 0
  %978 = vmatmul.mubr.bf16.gmra.mrb[0].mxu0 %v695
  %v979 = vpop.f32.mrb[0].mxu0
  %v980 = vadd.f32 %v587, %v979
  %v981 = vpop.f32.mrb[0].mxu0
  %v982 = vpop.f32.mrb[0].mxu0
  %v983 = vadd.f32 %v587, %v982
  %v984 = vpop.f32.mrb[0].mxu0
  %985 = vdwg.mxu0
  %v986 = vpack.c.bf16 %v735, %v732
  %v987 = vpack.c.bf16 %v743, %v740
  %v988 = vpack.c.bf16 %v751, %v748
  %v989 = vpack.c.bf16 %v759, %v756
  %v990 = vpack.c.bf16 %v767, %v764
  %v991 = vpack.c.bf16 %v775, %v772
  %v992 = vpack.c.bf16 %v783, %v780
  %v993 = vpack.c.bf16 %v791, %v788
  %v994 = vpack.c.bf16 %v799, %v796
  %v995 = vpack.c.bf16 %v807, %v804
  %v996 = vpack.c.bf16 %v815, %v812
  %v997 = vpack.c.bf16 %v823, %v820
  %v998 = vpack.c.bf16 %v831, %v828
  %v999 = vpack.c.bf16 %v839, %v836
  %v1000 = vpack.c.bf16 %v847, %v844
  %v1001 = vpack.c.bf16 %v855, %v852
  %v1002 = vpack.c.bf16 %v863, %v860
  %v1003 = vpack.c.bf16 %v871, %v868
  %v1004 = vpack.c.bf16 %v879, %v876
  %v1005 = vpack.c.bf16 %v887, %v884
  %v1006 = vpack.c.bf16 %v895, %v892
  %v1007 = vpack.c.bf16 %v903, %v900
  %v1008 = vpack.c.bf16 %v911, %v908
  %v1009 = vpack.c.bf16 %v919, %v916
  %v1010 = vpack.c.bf16 %v927, %v924
  %v1011 = vpack.c.bf16 %v935, %v932
  %v1012 = vpack.c.bf16 %v943, %v940
  %v1013 = vpack.c.bf16 %v951, %v948
  %v1014 = vpack.c.bf16 %v959, %v956
  %v1015 = vpack.c.bf16 %v967, %v964
  %v1016 = vpack.c.bf16 %v975, %v972
  %v1017 = vpack.c.bf16 %v983, %v980
  %v1018 = vmax.bf16 %v986, 0
  %v1019 = vmax.bf16 %v987, 0
  %v1020 = vmax.bf16 %v988, 0
  %v1021 = vmax.bf16 %v989, 0
  %v1022 = vmax.bf16 %v990, 0
  %v1023 = vmax.bf16 %v991, 0
  %v1024 = vmax.bf16 %v992, 0
  %v1025 = vmax.bf16 %v993, 0
  %v1026 = vmax.bf16 %v994, 0
  %v1027 = vmax.bf16 %v995, 0
  %v1028 = vmax.bf16 %v996, 0
  %v1029 = vmax.bf16 %v997, 0
  %v1030 = vmax.bf16 %v998, 0
  %v1031 = vmax.bf16 %v999, 0
  %v1032 = vmax.bf16 %v1000, 0
  %v1033 = vmax.bf16 %v1001, 0
  %v1034 = vmax.bf16 %v1002, 0
  %v1035 = vmax.bf16 %v1003, 0
  %v1036 = vmax.bf16 %v1004, 0
  %v1037 = vmax.bf16 %v1005, 0
  %v1038 = vmax.bf16 %v1006, 0
  %v1039 = vmax.bf16 %v1007, 0
  %v1040 = vmax.bf16 %v1008, 0
  %v1041 = vmax.bf16 %v1009, 0
  %v1042 = vmax.bf16 %v1010, 0
  %v1043 = vmax.bf16 %v1011, 0
  %v1044 = vmax.bf16 %v1012, 0
  %v1045 = vmax.bf16 %v1013, 0
  %v1046 = vmax.bf16 %v1014, 0
  %v1047 = vmax.bf16 %v1015, 0
  %v1048 = vmax.bf16 %v1016, 0
  %v1049 = vmax.bf16 %v1017, 0
  %v1050 = vld [vmem:[%s3] sm:$0xf]
  %v1051 = vld [vmem:[%s3 + $0x4] sm:$0xf]
  %v1052 = vld [vmem:[%s3 + $0x8] sm:$0xf]
  %v1053 = vld [vmem:[%s3 + $0xc] sm:$0xf]
  %v1054 = vlaneseq
  %v1055 = vshrl.u32 %v1054, 7
  %v1056 = vsub.s32 2, %v1055
  %v1057 = vrot.slane %v21, %v1056
  %v1062 = vunpack.c.l.b16 %v1050
  %v1063 = vunpack.c.l.b16 %v1051
  %v1064 = vunpack.c.l.b16 %v1052
  %v1065 = vunpack.c.l.b16 %v1053
  %v1066 = vpack.c.b16 %v1063, %v1062
  %v1067 = vpack.c.b16 %v1065, %v1064
  %v1071 = vsel %vm600, %v1018, 0
  %v1074 = vsel %vm600, %v1019, 0
  %v1077 = vsel %vm600, %v1020, 0
  %v1080 = vsel %vm600, %v1021, 0
  %v1083 = vsel %vm600, %v1022, 0
  %v1086 = vsel %vm600, %v1023, 0
  %v1089 = vsel %vm600, %v1024, 0
  %v1092 = vsel %vm600, %v1025, 0
  %v1095 = vsel %vm600, %v1026, 0
  %v1098 = vsel %vm600, %v1027, 0
  %v1101 = vsel %vm600, %v1028, 0
  %v1104 = vsel %vm600, %v1029, 0
  %v1107 = vsel %vm600, %v1030, 0
  %v1110 = vsel %vm600, %v1031, 0
  %v1113 = vsel %vm600, %v1032, 0
  %v1116 = vsel %vm600, %v1033, 0
  %v1119 = vsel %vm600, %v1034, 0
  %v1122 = vsel %vm600, %v1035, 0
  %v1125 = vsel %vm600, %v1036, 0
  %v1128 = vsel %vm600, %v1037, 0
  %v1131 = vsel %vm600, %v1038, 0
  %v1134 = vsel %vm600, %v1039, 0
  %v1137 = vsel %vm600, %v1040, 0
  %v1140 = vsel %vm600, %v1041, 0
  %v1143 = vsel %vm600, %v1042, 0
  %v1146 = vsel %vm600, %v1043, 0
  %v1149 = vsel %vm600, %v1044, 0
  %v1152 = vsel %vm600, %v1045, 0
  %v1155 = vsel %vm600, %v1046, 0
  %v1158 = vsel %vm600, %v1047, 0
  %v1161 = vsel %vm600, %v1048, 0
  %v1164 = vsel %vm600, %v1049, 0
  %1166 = vmatprep.subr.bf16.mxu0 0
  %1167 = vmatpush1.bf16.msra.mxu0 %v1066
  %1168 = vmatprep.subr.bf16.mxu0 0
  %1169 = vmatpush1.bf16.msra.mxu0 %v1067
  %1170 = vmatprep.subr.bf16.mxu0 0
  %1171 = vmatpush1.bf16.msra.mxu0 0
  %1172 = vmatprep.subr.bf16.mxu0 0
  %1173 = vmatpush1.bf16.msra.mxu0 0
  %1174 = vmatprep.subr.bf16.mxu0 0
  %1175 = vmatpush1.bf16.msra.mxu0 0
  %1176 = vmatprep.subr.bf16.mxu0 0
  %1177 = vmatpush1.bf16.msra.mxu0 0
  %1178 = vmatprep.subr.bf16.mxu0 0
  %1179 = vmatpush1.bf16.msra.mxu0 0
  %1180 = vmatprep.subr.bf16.mxu0 0
  %1181 = vmatpush1.bf16.msra.mxu0 0
  %1182 = vmatprep.subr.bf16.mxu0 0
  %1183 = vmatpush1.bf16.msra.mxu0 0
  %1184 = vmatprep.subr.bf16.mxu0 0
  %1185 = vmatpush1.bf16.msra.mxu0 0
  %1186 = vmatprep.subr.bf16.mxu0 0
  %1187 = vmatpush1.bf16.msra.mxu0 0
  %1188 = vmatprep.subr.bf16.mxu0 0
  %1189 = vmatpush1.bf16.msra.mxu0 0
  %1190 = vmatprep.subr.bf16.mxu0 0
  %1191 = vmatpush1.bf16.msra.mxu0 0
  %1192 = vmatprep.subr.bf16.mxu0 0
  %1193 = vmatpush1.bf16.msra.mxu0 0
  %1194 = vmatprep.subr.bf16.mxu0 0
  %1195 = vmatpush1.bf16.msra.mxu0 0
  %1196 = vmatprep.subr.bf16.mxu0 0
  %1197 = vmatpush1.bf16.msra.mxu0 0
  %1198 = vmatprep.mubr.bf16.mxu0 0
  %1199 = vmatmul.mubr.bf16.gmra.mrb[0].mxu0 %v1071
  %v1200 = vpop.f32.mrb[0].mxu0
  %v1201 = vadd.f32 %v1057, %v1200
  %v1202 = vpop.f32.mrb[0].mxu0
  %v1203 = vpop.f32.mrb[0].mxu0
  %v1204 = vadd.f32 %v1057, %v1203
  %v1205 = vpop.f32.mrb[0].mxu0
  %1206 = vmatprep.mubr.bf16.mxu0 0
  %1207 = vmatmul.mubr.bf16.gmra.mrb[0].mxu0 %v1074
  %v1208 = vpop.f32.mrb[0].mxu0
  %v1209 = vadd.f32 %v1057, %v1208
  %v1210 = vpop.f32.mrb[0].mxu0
  %v1211 = vpop.f32.mrb[0].mxu0
  %v1212 = vadd.f32 %v1057, %v1211
  %v1213 = vpop.f32.mrb[0].mxu0
  %1214 = vmatprep.mubr.bf16.mxu0 0
  %1215 = vmatmul.mubr.bf16.gmra.mrb[0].mxu0 %v1077
  %v1216 = vpop.f32.mrb[0].mxu0
  %v1217 = vadd.f32 %v1057, %v1216
  %v1218 = vpop.f32.mrb[0].mxu0
  %v1219 = vpop.f32.mrb[0].mxu0
  %v1220 = vadd.f32 %v1057, %v1219
  %v1221 = vpop.f32.mrb[0].mxu0
  %1222 = vmatprep.mubr.bf16.mxu0 0
  %1223 = vmatmul.mubr.bf16.gmra.mrb[0].mxu0 %v1080
  %v1224 = vpop.f32.mrb[0].mxu0
  %v1225 = vadd.f32 %v1057, %v1224
  %v1226 = vpop.f32.mrb[0].mxu0
  %v1227 = vpop.f32.mrb[0].mxu0
  %v1228 = vadd.f32 %v1057, %v1227
  %v1229 = vpop.f32.mrb[0].mxu0
  %1230 = vmatprep.mubr.bf16.mxu0 0
  %1231 = vmatmul.mubr.bf16.gmra.mrb[0].mxu0 %v1083
  %v1232 = vpop.f32.mrb[0].mxu0
  %v1233 = vadd.f32 %v1057, %v1232
  %v1234 = vpop.f32.mrb[0].mxu0
  %v1235 = vpop.f32.mrb[0].mxu0
  %v1236 = vadd.f32 %v1057, %v1235
  %v1237 = vpop.f32.mrb[0].mxu0
  %1238 = vmatprep.mubr.bf16.mxu0 0
  %1239 = vmatmul.mubr.bf16.gmra.mrb[0].mxu0 %v1086
  %v1240 = vpop.f32.mrb[0].mxu0
  %v1241 = vadd.f32 %v1057, %v1240
  %v1242 = vpop.f32.mrb[0].mxu0
  %v1243 = vpop.f32.mrb[0].mxu0
  %v1244 = vadd.f32 %v1057, %v1243
  %v1245 = vpop.f32.mrb[0].mxu0
  %1246 = vmatprep.mubr.bf16.mxu0 0
  %1247 = vmatmul.mubr.bf16.gmra.mrb[0].mxu0 %v1089
  %v1248 = vpop.f32.mrb[0].mxu0
  %v1249 = vadd.f32 %v1057, %v1248
  %v1250 = vpop.f32.mrb[0].mxu0
  %v1251 = vpop.f32.mrb[0].mxu0
  %v1252 = vadd.f32 %v1057, %v1251
  %v1253 = vpop.f32.mrb[0].mxu0
  %1254 = vmatprep.mubr.bf16.mxu0 0
  %1255 = vmatmul.mubr.bf16.gmra.mrb[0].mxu0 %v1092
  %v1256 = vpop.f32.mrb[0].mxu0
  %v1257 = vadd.f32 %v1057, %v1256
  %v1258 = vpop.f32.mrb[0].mxu0
  %v1259 = vpop.f32.mrb[0].mxu0
  %v1260 = vadd.f32 %v1057, %v1259
  %v1261 = vpop.f32.mrb[0].mxu0
  %1262 = vmatprep.mubr.bf16.mxu0 0
  %1263 = vmatmul.mubr.bf16.gmra.mrb[0].mxu0 %v1095
  %v1264 = vpop.f32.mrb[0].mxu0
  %v1265 = vadd.f32 %v1057, %v1264
  %v1266 = vpop.f32.mrb[0].mxu0
  %v1267 = vpop.f32.mrb[0].mxu0
  %v1268 = vadd.f32 %v1057, %v1267
  %v1269 = vpop.f32.mrb[0].mxu0
  %1270 = vmatprep.mubr.bf16.mxu0 0
  %1271 = vmatmul.mubr.bf16.gmra.mrb[0].mxu0 %v1098
  %v1272 = vpop.f32.mrb[0].mxu0
  %v1273 = vadd.f32 %v1057, %v1272
  %v1274 = vpop.f32.mrb[0].mxu0
  %v1275 = vpop.f32.mrb[0].mxu0
  %v1276 = vadd.f32 %v1057, %v1275
  %v1277 = vpop.f32.mrb[0].mxu0
  %1278 = vmatprep.mubr.bf16.mxu0 0
  %1279 = vmatmul.mubr.bf16.gmra.mrb[0].mxu0 %v1101
  %v1280 = vpop.f32.mrb[0].mxu0
  %v1281 = vadd.f32 %v1057, %v1280
  %v1282 = vpop.f32.mrb[0].mxu0
  %v1283 = vpop.f32.mrb[0].mxu0
  %v1284 = vadd.f32 %v1057, %v1283
  %v1285 = vpop.f32.mrb[0].mxu0
  %1286 = vmatprep.mubr.bf16.mxu0 0
  %1287 = vmatmul.mubr.bf16.gmra.mrb[0].mxu0 %v1104
  %v1288 = vpop.f32.mrb[0].mxu0
  %v1289 = vadd.f32 %v1057, %v1288
  %v1290 = vpop.f32.mrb[0].mxu0
  %v1291 = vpop.f32.mrb[0].mxu0
  %v1292 = vadd.f32 %v1057, %v1291
  %v1293 = vpop.f32.mrb[0].mxu0
  %1294 = vmatprep.mubr.bf16.mxu0 0
  %1295 = vmatmul.mubr.bf16.gmra.mrb[0].mxu0 %v1107
  %v1296 = vpop.f32.mrb[0].mxu0
  %v1297 = vadd.f32 %v1057, %v1296
  %v1298 = vpop.f32.mrb[0].mxu0
  %v1299 = vpop.f32.mrb[0].mxu0
  %v1300 = vadd.f32 %v1057, %v1299
  %v1301 = vpop.f32.mrb[0].mxu0
  %1302 = vmatprep.mubr.bf16.mxu0 0
  %1303 = vmatmul.mubr.bf16.gmra.mrb[0].mxu0 %v1110
  %v1304 = vpop.f32.mrb[0].mxu0
  %v1305 = vadd.f32 %v1057, %v1304
  %v1306 = vpop.f32.mrb[0].mxu0
  %v1307 = vpop.f32.mrb[0].mxu0
  %v1308 = vadd.f32 %v1057, %v1307
  %v1309 = vpop.f32.mrb[0].mxu0
  %1310 = vmatprep.mubr.bf16.mxu0 0
  %1311 = vmatmul.mubr.bf16.gmra.mrb[0].mxu0 %v1113
  %v1312 = vpop.f32.mrb[0].mxu0
  %v1313 = vadd.f32 %v1057, %v1312
  %v1314 = vpop.f32.mrb[0].mxu0
  %v1315 = vpop.f32.mrb[0].mxu0
  %v1316 = vadd.f32 %v1057, %v1315
  %v1317 = vpop.f32.mrb[0].mxu0
  %1318 = vmatprep.mubr.bf16.mxu0 0
  %1319 = vmatmul.mubr.bf16.gmra.mrb[0].mxu0 %v1116
  %v1320 = vpop.f32.mrb[0].mxu0
  %v1321 = vadd.f32 %v1057, %v1320
  %v1322 = vpop.f32.mrb[0].mxu0
  %v1323 = vpop.f32.mrb[0].mxu0
  %v1324 = vadd.f32 %v1057, %v1323
  %v1325 = vpop.f32.mrb[0].mxu0
  %1326 = vmatprep.mubr.bf16.mxu0 0
  %1327 = vmatmul.mubr.bf16.gmra.mrb[0].mxu0 %v1119
  %v1328 = vpop.f32.mrb[0].mxu0
  %v1329 = vadd.f32 %v1057, %v1328
  %v1330 = vpop.f32.mrb[0].mxu0
  %v1331 = vpop.f32.mrb[0].mxu0
  %v1332 = vadd.f32 %v1057, %v1331
  %v1333 = vpop.f32.mrb[0].mxu0
  %1334 = vmatprep.mubr.bf16.mxu0 0
  %1335 = vmatmul.mubr.bf16.gmra.mrb[0].mxu0 %v1122
  %v1336 = vpop.f32.mrb[0].mxu0
  %v1337 = vadd.f32 %v1057, %v1336
  %v1338 = vpop.f32.mrb[0].mxu0
  %v1339 = vpop.f32.mrb[0].mxu0
  %v1340 = vadd.f32 %v1057, %v1339
  %v1341 = vpop.f32.mrb[0].mxu0
  %1342 = vmatprep.mubr.bf16.mxu0 0
  %1343 = vmatmul.mubr.bf16.gmra.mrb[0].mxu0 %v1125
  %v1344 = vpop.f32.mrb[0].mxu0
  %v1345 = vadd.f32 %v1057, %v1344
  %v1346 = vpop.f32.mrb[0].mxu0
  %v1347 = vpop.f32.mrb[0].mxu0
  %v1348 = vadd.f32 %v1057, %v1347
  %v1349 = vpop.f32.mrb[0].mxu0
  %1350 = vmatprep.mubr.bf16.mxu0 0
  %1351 = vmatmul.mubr.bf16.gmra.mrb[0].mxu0 %v1128
  %v1352 = vpop.f32.mrb[0].mxu0
  %v1353 = vadd.f32 %v1057, %v1352
  %v1354 = vpop.f32.mrb[0].mxu0
  %v1355 = vpop.f32.mrb[0].mxu0
  %v1356 = vadd.f32 %v1057, %v1355
  %v1357 = vpop.f32.mrb[0].mxu0
  %1358 = vmatprep.mubr.bf16.mxu0 0
  %1359 = vmatmul.mubr.bf16.gmra.mrb[0].mxu0 %v1131
  %v1360 = vpop.f32.mrb[0].mxu0
  %v1361 = vadd.f32 %v1057, %v1360
  %v1362 = vpop.f32.mrb[0].mxu0
  %v1363 = vpop.f32.mrb[0].mxu0
  %v1364 = vadd.f32 %v1057, %v1363
  %v1365 = vpop.f32.mrb[0].mxu0
  %1366 = vmatprep.mubr.bf16.mxu0 0
  %1367 = vmatmul.mubr.bf16.gmra.mrb[0].mxu0 %v1134
  %v1368 = vpop.f32.mrb[0].mxu0
  %v1369 = vadd.f32 %v1057, %v1368
  %v1370 = vpop.f32.mrb[0].mxu0
  %v1371 = vpop.f32.mrb[0].mxu0
  %v1372 = vadd.f32 %v1057, %v1371
  %v1373 = vpop.f32.mrb[0].mxu0
  %1374 = vmatprep.mubr.bf16.mxu0 0
  %1375 = vmatmul.mubr.bf16.gmra.mrb[0].mxu0 %v1137
  %v1376 = vpop.f32.mrb[0].mxu0
  %v1377 = vadd.f32 %v1057, %v1376
  %v1378 = vpop.f32.mrb[0].mxu0
  %v1379 = vpop.f32.mrb[0].mxu0
  %v1380 = vadd.f32 %v1057, %v1379
  %v1381 = vpop.f32.mrb[0].mxu0
  %1382 = vmatprep.mubr.bf16.mxu0 0
  %1383 = vmatmul.mubr.bf16.gmra.mrb[0].mxu0 %v1140
  %v1384 = vpop.f32.mrb[0].mxu0
  %v1385 = vadd.f32 %v1057, %v1384
  %v1386 = vpop.f32.mrb[0].mxu0
  %v1387 = vpop.f32.mrb[0].mxu0
  %v1388 = vadd.f32 %v1057, %v1387
  %v1389 = vpop.f32.mrb[0].mxu0
  %1390 = vmatprep.mubr.bf16.mxu0 0
  %1391 = vmatmul.mubr.bf16.gmra.mrb[0].mxu0 %v1143
  %v1392 = vpop.f32.mrb[0].mxu0
  %v1393 = vadd.f32 %v1057, %v1392
  %v1394 = vpop.f32.mrb[0].mxu0
  %v1395 = vpop.f32.mrb[0].mxu0
  %v1396 = vadd.f32 %v1057, %v1395
  %v1397 = vpop.f32.mrb[0].mxu0
  %1398 = vmatprep.mubr.bf16.mxu0 0
  %1399 = vmatmul.mubr.bf16.gmra.mrb[0].mxu0 %v1146
  %v1400 = vpop.f32.mrb[0].mxu0
  %v1401 = vadd.f32 %v1057, %v1400
  %v1402 = vpop.f32.mrb[0].mxu0
  %v1403 = vpop.f32.mrb[0].mxu0
  %v1404 = vadd.f32 %v1057, %v1403
  %v1405 = vpop.f32.mrb[0].mxu0
  %1406 = vmatprep.mubr.bf16.mxu0 0
  %1407 = vmatmul.mubr.bf16.gmra.mrb[0].mxu0 %v1149
  %v1408 = vpop.f32.mrb[0].mxu0
  %v1409 = vadd.f32 %v1057, %v1408
  %v1410 = vpop.f32.mrb[0].mxu0
  %v1411 = vpop.f32.mrb[0].mxu0
  %v1412 = vadd.f32 %v1057, %v1411
  %v1413 = vpop.f32.mrb[0].mxu0
  %1414 = vmatprep.mubr.bf16.mxu0 0
  %1415 = vmatmul.mubr.bf16.gmra.mrb[0].mxu0 %v1152
  %v1416 = vpop.f32.mrb[0].mxu0
  %v1417 = vadd.f32 %v1057, %v1416
  %v1418 = vpop.f32.mrb[0].mxu0
  %v1419 = vpop.f32.mrb[0].mxu0
  %v1420 = vadd.f32 %v1057, %v1419
  %v1421 = vpop.f32.mrb[0].mxu0
  %1422 = vmatprep.mubr.bf16.mxu0 0
  %1423 = vmatmul.mubr.bf16.gmra.mrb[0].mxu0 %v1155
  %v1424 = vpop.f32.mrb[0].mxu0
  %v1425 = vadd.f32 %v1057, %v1424
  %v1426 = vpop.f32.mrb[0].mxu0
  %v1427 = vpop.f32.mrb[0].mxu0
  %v1428 = vadd.f32 %v1057, %v1427
  %v1429 = vpop.f32.mrb[0].mxu0
  %1430 = vmatprep.mubr.bf16.mxu0 0
  %1431 = vmatmul.mubr.bf16.gmra.mrb[0].mxu0 %v1158
  %v1432 = vpop.f32.mrb[0].mxu0
  %v1433 = vadd.f32 %v1057, %v1432
  %v1434 = vpop.f32.mrb[0].mxu0
  %v1435 = vpop.f32.mrb[0].mxu0
  %v1436 = vadd.f32 %v1057, %v1435
  %v1437 = vpop.f32.mrb[0].mxu0
  %1438 = vmatprep.mubr.bf16.mxu0 0
  %1439 = vmatmul.mubr.bf16.gmra.mrb[0].mxu0 %v1161
  %v1440 = vpop.f32.mrb[0].mxu0
  %v1441 = vadd.f32 %v1057, %v1440
  %v1442 = vpop.f32.mrb[0].mxu0
  %v1443 = vpop.f32.mrb[0].mxu0
  %v1444 = vadd.f32 %v1057, %v1443
  %v1445 = vpop.f32.mrb[0].mxu0
  %1446 = vmatprep.mubr.bf16.mxu0 0
  %1447 = vmatmul.mubr.bf16.gmra.mrb[0].mxu0 %v1164
  %v1448 = vpop.f32.mrb[0].mxu0
  %v1449 = vadd.f32 %v1057, %v1448
  %v1450 = vpop.f32.mrb[0].mxu0
  %v1451 = vpop.f32.mrb[0].mxu0
  %v1452 = vadd.f32 %v1057, %v1451
  %v1453 = vpop.f32.mrb[0].mxu0
  %1454 = vdwg.mxu0
  %vm1455 = vcmask 31744
  %1456 = vst.msk [vmem:[%s5] sm:$0xff] %vm1455, %v1201
  %1457 = vst.msk [vmem:[%s5 + $0x8] sm:$0xff] %vm1455, %v1204
  %1458 = vst.msk [vmem:[%s5 + $0x10] sm:$0xff] %vm1455, %v1209
  %1459 = vst.msk [vmem:[%s5 + $0x18] sm:$0xff] %vm1455, %v1212
  %1460 = vst.msk [vmem:[%s5 + $0x20] sm:$0xff] %vm1455, %v1217
  %1461 = vst.msk [vmem:[%s5 + $0x28] sm:$0xff] %vm1455, %v1220
  %1462 = vst.msk [vmem:[%s5 + $0x30] sm:$0xff] %vm1455, %v1225
  %1463 = vst.msk [vmem:[%s5 + $0x38] sm:$0xff] %vm1455, %v1228
  %1464 = vst.msk [vmem:[%s5 + $0x40] sm:$0xff] %vm1455, %v1233
  %1465 = vst.msk [vmem:[%s5 + $0x48] sm:$0xff] %vm1455, %v1236
  %1466 = vst.msk [vmem:[%s5 + $0x50] sm:$0xff] %vm1455, %v1241
  %1467 = vst.msk [vmem:[%s5 + $0x58] sm:$0xff] %vm1455, %v1244
  %1468 = vst.msk [vmem:[%s5 + $0x60] sm:$0xff] %vm1455, %v1249
  %1469 = vst.msk [vmem:[%s5 + $0x68] sm:$0xff] %vm1455, %v1252
  %1470 = vst.msk [vmem:[%s5 + $0x70] sm:$0xff] %vm1455, %v1257
  %1471 = vst.msk [vmem:[%s5 + $0x78] sm:$0xff] %vm1455, %v1260
  %1472 = vst.msk [vmem:[%s5 + $0x80] sm:$0xff] %vm1455, %v1265
  %1473 = vst.msk [vmem:[%s5 + $0x88] sm:$0xff] %vm1455, %v1268
  %1474 = vst.msk [vmem:[%s5 + $0x90] sm:$0xff] %vm1455, %v1273
  %1475 = vst.msk [vmem:[%s5 + $0x98] sm:$0xff] %vm1455, %v1276
  %1476 = vst.msk [vmem:[%s5 + $0xa0] sm:$0xff] %vm1455, %v1281
  %1477 = vst.msk [vmem:[%s5 + $0xa8] sm:$0xff] %vm1455, %v1284
  %1478 = vst.msk [vmem:[%s5 + $0xb0] sm:$0xff] %vm1455, %v1289
  %1479 = vst.msk [vmem:[%s5 + $0xb8] sm:$0xff] %vm1455, %v1292
  %1480 = vst.msk [vmem:[%s5 + $0xc0] sm:$0xff] %vm1455, %v1297
  %1481 = vst.msk [vmem:[%s5 + $0xc8] sm:$0xff] %vm1455, %v1300
  %1482 = vst.msk [vmem:[%s5 + $0xd0] sm:$0xff] %vm1455, %v1305
  %1483 = vst.msk [vmem:[%s5 + $0xd8] sm:$0xff] %vm1455, %v1308
  %1484 = vst.msk [vmem:[%s5 + $0xe0] sm:$0xff] %vm1455, %v1313
  %1485 = vst.msk [vmem:[%s5 + $0xe8] sm:$0xff] %vm1455, %v1316
  %1486 = vst.msk [vmem:[%s5 + $0xf0] sm:$0xff] %vm1455, %v1321
  %1487 = vst.msk [vmem:[%s5 + $0xf8] sm:$0xff] %vm1455, %v1324
  %1488 = vst.msk [vmem:[%s5 + $0x100] sm:$0xff] %vm1455, %v1329
  %1489 = vst.msk [vmem:[%s5 + $0x108] sm:$0xff] %vm1455, %v1332
  %1490 = vst.msk [vmem:[%s5 + $0x110] sm:$0xff] %vm1455, %v1337
  %1491 = vst.msk [vmem:[%s5 + $0x118] sm:$0xff] %vm1455, %v1340
  %1492 = vst.msk [vmem:[%s5 + $0x120] sm:$0xff] %vm1455, %v1345
  %1493 = vst.msk [vmem:[%s5 + $0x128] sm:$0xff] %vm1455, %v1348
  %1494 = vst.msk [vmem:[%s5 + $0x130] sm:$0xff] %vm1455, %v1353
  %1495 = vst.msk [vmem:[%s5 + $0x138] sm:$0xff] %vm1455, %v1356
  %1496 = vst.msk [vmem:[%s5 + $0x140] sm:$0xff] %vm1455, %v1361
  %1497 = vst.msk [vmem:[%s5 + $0x148] sm:$0xff] %vm1455, %v1364
  %1498 = vst.msk [vmem:[%s5 + $0x150] sm:$0xff] %vm1455, %v1369
  %1499 = vst.msk [vmem:[%s5 + $0x158] sm:$0xff] %vm1455, %v1372
  %1500 = vst.msk [vmem:[%s5 + $0x160] sm:$0xff] %vm1455, %v1377
  %1501 = vst.msk [vmem:[%s5 + $0x168] sm:$0xff] %vm1455, %v1380
  %1502 = vst.msk [vmem:[%s5 + $0x170] sm:$0xff] %vm1455, %v1385
  %1503 = vst.msk [vmem:[%s5 + $0x178] sm:$0xff] %vm1455, %v1388
  %1504 = vst.msk [vmem:[%s5 + $0x180] sm:$0xff] %vm1455, %v1393
  %1505 = vst.msk [vmem:[%s5 + $0x188] sm:$0xff] %vm1455, %v1396
  %1506 = vst.msk [vmem:[%s5 + $0x190] sm:$0xff] %vm1455, %v1401
  %1507 = vst.msk [vmem:[%s5 + $0x198] sm:$0xff] %vm1455, %v1404
  %1508 = vst.msk [vmem:[%s5 + $0x1a0] sm:$0xff] %vm1455, %v1409
  %1509 = vst.msk [vmem:[%s5 + $0x1a8] sm:$0xff] %vm1455, %v1412
  %1510 = vst.msk [vmem:[%s5 + $0x1b0] sm:$0xff] %vm1455, %v1417
  %1511 = vst.msk [vmem:[%s5 + $0x1b8] sm:$0xff] %vm1455, %v1420
  %1512 = vst.msk [vmem:[%s5 + $0x1c0] sm:$0xff] %vm1455, %v1425
  %1513 = vst.msk [vmem:[%s5 + $0x1c8] sm:$0xff] %vm1455, %v1428
  %1514 = vst.msk [vmem:[%s5 + $0x1d0] sm:$0xff] %vm1455, %v1433
  %1515 = vst.msk [vmem:[%s5 + $0x1d8] sm:$0xff] %vm1455, %v1436
  %1516 = vst.msk [vmem:[%s5 + $0x1e0] sm:$0xff] %vm1455, %v1441
  %1517 = vst.msk [vmem:[%s5 + $0x1e8] sm:$0xff] %vm1455, %v1444
  %1518 = vst.msk [vmem:[%s5 + $0x1f0] sm:$0xff] %vm1455, %v1449
  %1519 = vst.msk [vmem:[%s5 + $0x1f8] sm:$0xff] %vm1455, %v1452
  // Predicated region
  $region22: #{tpu_custom_call.1} parent=0 // pred_check
    _
  $region23: #{tpu_custom_call.1} parent=0 // pred_check_branch
    %1521 = sbr.rel (0) target = $region25
  $region24: #{tpu_custom_call.1} parent=0 // pred_region
    _
  $region25: #{tpu_custom_call.1} parent=0 // pred_fallthru
    _
  // Predicated region
  $region26: #{tpu_custom_call.1} parent=0 // pred_check
    _
  $region27: #{tpu_custom_call.1} parent=0 // pred_check_branch
    %1523 = sbr.rel (0) target = $region29
  $region28: #{tpu_custom_call.1} parent=0 // pred_region
    _
  $region29: #{tpu_custom_call.1} parent=0 // pred_fallthru
    _

</llo_original>
